<compile_context>
chip_gen: v5e
topology: v5e:2x2
jax: 0.10.0
libtpu: 0.0.40
codegen_flags: <defaults>
</compile_context>

<pallas_src>
import functools

import jax
import jax.numpy as jnp
from jax import lax
from jax.experimental import pallas as pl
from jax.experimental.pallas import tpu as pltpu


def _round_up(n, m):
    return ((n + m - 1) // m) * m


def drnn_kernel(x_ref, wih_ref, bias_ref, whh_ref, w1_ref, b1_ref,
                w2_ref, b2_ref, wo_ref, bo_ref, out_ref,
                h_ref, c_ref, acc_ref, hbuf_ref):
    """One (batch block, time chunk) grid step of the DRNN forward.

    x_ref    : (Tc, Bblk, I)  raw input chunk (time-major), f32
    wih_ref  : (I, 4H)        input->gate weight (transposed), f32
    bias_ref : (1, 4H)        b_ih + b_hh, f32
    whh_ref  : (H, 4H)        recurrent weight (transposed), mxu dtype
    w1_ref   : (Tc*H, F)      fc1 weight chunk (transposed, rows = t*H + h)
    b1/b2/bo : (1, F)/(1, F)/(1, O) biases, f32
    w2_ref   : (F, F), wo_ref : (F, O)   mxu dtype
    out_ref  : (Bblk, O)      written only on the last time chunk
    h_ref/c_ref : (Bblk, H) f32   persistent LSTM state (scratch)
    acc_ref  : (Bblk, F) f32      persistent fc1 accumulator (scratch)
    hbuf_ref : (Bblk, Tc*H) f32   chunk-local flattened lstm_out (scratch)
    """
    t_chunk = pl.program_id(1)
    n_t = pl.num_programs(1)
    Tc, _, I = x_ref.shape
    H = whh_ref.shape[0]
    mxu_dt = whh_ref.dtype

    @pl.when(t_chunk == 0)
    def _init():
        h_ref[...] = jnp.zeros_like(h_ref)
        c_ref[...] = jnp.zeros_like(c_ref)
        acc_ref[...] = jnp.zeros_like(acc_ref)

    bias = bias_ref[...]                       # (1, 4H) f32
    h = h_ref[...]                             # carry state in values/vregs
    c = c_ref[...]

    # Short static unroll over the chunk (Tc is small; the grid covers T).
    for t in range(Tc):
        xt = x_ref[t]                          # (Bblk, I) f32
        if I == 1:
            # input_size == 1: x @ W_ih^T is a rank-1 broadcast multiply (VPU).
            gx = xt * wih_ref[...]             # (Bblk,1)*(1,4H) -> (Bblk,4H)
        else:
            gx = jnp.dot(xt.astype(mxu_dt), wih_ref[...].astype(mxu_dt),
                         preferred_element_type=jnp.float32)
        # Loop-invariant RHS read straight from VMEM each step.
        gates = gx + bias + jnp.dot(h.astype(mxu_dt), whh_ref[...],
                                    preferred_element_type=jnp.float32)
        # PyTorch gate order: i, f, g, o.
        i_g = jax.nn.sigmoid(gates[:, 0 * H:1 * H])
        f_g = jax.nn.sigmoid(gates[:, 1 * H:2 * H])
        g_g = jnp.tanh(gates[:, 2 * H:3 * H])
        o_g = jax.nn.sigmoid(gates[:, 3 * H:4 * H])
        c = f_g * c + i_g * g_g
        h = o_g * jnp.tanh(c)
        hbuf_ref[:, t * H:(t + 1) * H] = h     # static, in-chunk offset

    h_ref[...] = h
    c_ref[...] = c

    # fc1 partial sum for this chunk: one matmul over Tc*H contracted rows.
    acc_ref[...] += jnp.dot(hbuf_ref[...].astype(mxu_dt), w1_ref[...],
                            preferred_element_type=jnp.float32)

    @pl.when(t_chunk == n_t - 1)
    def _finalize():
        z1 = jnp.maximum(acc_ref[...] + b1_ref[...], 0.0)
        z2 = jnp.dot(z1.astype(mxu_dt), w2_ref[...],
                     preferred_element_type=jnp.float32)
        z2 = jnp.maximum(z2 + b2_ref[...], 0.0)
        out = jnp.dot(z2.astype(mxu_dt), wo_ref[...],
                      preferred_element_type=jnp.float32)
        out_ref[...] = (out + bo_ref[...]).astype(out_ref.dtype)


@functools.partial(jax.jit,
                   static_argnames=("time_chunk", "batch_block", "mxu_dtype"))
def drnn_forward(x, params, *, time_chunk=4, batch_block=None,
                 mxu_dtype=jnp.float32):
    """x: (B, T, I) float32, batch-first (same as the PyTorch module)."""
    f32 = jnp.float32
    B, T, I = x.shape
    H = params["whh"].shape[1]                 # lstm_hidden_size
    F = params["w1"].shape[0]                  # fully_connected_size
    O = params["wo"].shape[0]                  # output_size
    G = params["wih"].shape[0]                 # 4*H

    Tc = min(time_chunk, T)
    Tp = _round_up(T, Tc)                      # pad T up to a chunk multiple
    Bblk = B if batch_block is None else min(batch_block, B)
    Bp = _round_up(B, Bblk)
    n_b, n_t = Bp // Bblk, Tp // Tc

    x = x.astype(f32)
    # Time-major layout so a (Tc, Bblk, I) block keeps its last two dims at
    # full extent / multiples of 8; raw x is ~4H/I times smaller than the old
    # precomputed xg, so HBM traffic is minimal.  Padded timesteps carry zero
    # input; their fc1 rows below are zero, so they do not affect the output.
    x_t = jnp.pad(x, ((0, Bp - B), (0, Tp - T), (0, 0))).transpose(1, 0, 2)

    wih_t = params["wih"].astype(f32).T                        # (I, 4H)
    bias = (params["bih"] + params["bhh"]).astype(f32)[None]   # (1, 4H)
    whh_t = params["whh"].astype(mxu_dtype).T                  # (H, 4H)

    # fc1 weight transposed to (T*H, F); rows already ordered t*H + h, which
    # matches PyTorch's lstm_out.view(B, -1).  No zero-row inflation.
    w1_t = params["w1"].astype(mxu_dtype).T                    # (T*H, F)
    if Tp != T:
        w1_t = jnp.pad(w1_t, ((0, (Tp - T) * H), (0, 0)))
    b1 = params["b1"].astype(f32)[None]                        # (1, F)
    w2_t = params["w2"].astype(mxu_dtype).T                    # (F, F)
    b2 = params["b2"].astype(f32)[None]                        # (1, F)
    wo_t = params["wo"].astype(mxu_dtype).T                    # (F, O)
    bo = params["bo"].astype(f32)[None]                        # (1, O)

    def const_spec(shape):
        return pl.BlockSpec(shape, lambda b, t, _n=len(shape): (0,) * _n)

    grid_spec = pltpu.PrefetchScalarGridSpec(
        num_scalar_prefetch=0,
        grid=(n_b, n_t),
        in_specs=[
            pl.BlockSpec((Tc, Bblk, I), lambda b, t: (t, b, 0)),   # x chunk
            const_spec((I, G)),                                    # wih^T
            const_spec((1, G)),                                    # bias
            const_spec((H, G)),                                    # whh^T
            pl.BlockSpec((Tc * H, F), lambda b, t: (t, 0)),        # w1 chunk
            const_spec((1, F)),                                    # b1
            const_spec((F, F)),                                    # w2^T
            const_spec((1, F)),                                    # b2
            const_spec((F, O)),                                    # wo^T
            const_spec((1, O)),                                    # bo
        ],
        out_specs=pl.BlockSpec((Bblk, O), lambda b, t: (b, 0)),
        scratch_shapes=[
            pltpu.VMEM((Bblk, H), f32),          # h   (persists over t axis)
            pltpu.VMEM((Bblk, H), f32),          # c
            pltpu.VMEM((Bblk, F), f32),          # fc1 accumulator
            pltpu.VMEM((Bblk, Tc * H), f32),     # chunk-local lstm_out
        ],
    )

    out = pl.pallas_call(
        drnn_kernel,
        out_shape=jax.ShapeDtypeStruct((Bp, O), f32),
        grid_spec=grid_spec,
        compiler_params=pltpu.CompilerParams(
            # batch -> "parallel" (megacore split on v7x, no-op on v5e/v6e),
            # time  -> "arbitrary" (serial recurrence via persistent scratch).
            dimension_semantics=("parallel", "arbitrary")),
    )(x_t, wih_t, bias, whh_t, w1_t, b1, w2_t, b2, wo_t, bo)
    return out[:B]


def init_params(key, input_size, hidden, fc, out, seq_len):
    """Deterministic init mirroring the PyTorch parameter shapes."""
    ks = jax.random.split(key, 10)
    s_lstm = 1.0 / jnp.sqrt(hidden)
    s_fc1 = 1.0 / jnp.sqrt(hidden * seq_len)
    s_fc = 1.0 / jnp.sqrt(fc)

    def u(k, shape, scale):
        return jax.random.uniform(k, shape, jnp.float32, -scale, scale)

    return {
        "wih": u(ks[0], (4 * hidden, input_size), s_lstm),
        "whh": u(ks[1], (4 * hidden, hidden), s_lstm),
        "bih": u(ks[2], (4 * hidden,), s_lstm),
        "bhh": u(ks[3], (4 * hidden,), s_lstm),
        "w1": u(ks[4], (fc, hidden * seq_len), s_fc1),
        "b1": u(ks[5], (fc,), s_fc1),
        "w2": u(ks[6], (fc, fc), s_fc),
        "b2": u(ks[7], (fc,), s_fc),
        "wo": u(ks[8], (out, fc), s_fc),
        "bo": u(ks[9], (out,), s_fc),
    }


def drnn_reference(x, p):
    """Pure-JAX reference matching PyTorch nn.LSTM + Linear semantics."""
    hp = lax.Precision.HIGHEST
    B, T, _ = x.shape
    H = p["whh"].shape[1]
    h = jnp.zeros((B, H), jnp.float32)
    c = jnp.zeros((B, H), jnp.float32)
    outs = []
    for t in range(T):
        gates = (jnp.dot(x[:, t, :], p["wih"].T, precision=hp)
                 + jnp.dot(h, p["whh"].T, precision=hp)
                 + p["bih"] + p["bhh"])
        i = jax.nn.sigmoid(gates[:, :H])
        f = jax.nn.sigmoid(gates[:, H:2 * H])
        g = jnp.tanh(gates[:, 2 * H:3 * H])
        o = jax.nn.sigmoid(gates[:, 3 * H:])
        c = f * c + i * g
        h = o * jnp.tanh(c)
        outs.append(h)
    lstm_out = jnp.stack(outs, axis=1).reshape(B, -1)
    z = jnp.maximum(jnp.dot(lstm_out, p["w1"].T, precision=hp) + p["b1"], 0.0)
    z = jnp.maximum(jnp.dot(z, p["w2"].T, precision=hp) + p["b2"], 0.0)
    return jnp.dot(z, p["wo"].T, precision=hp) + p["bo"]


if __name__ == "__main__":
    # Small shapes consistent with DRNN(input_size=1, ...): batch=16, seq=8,
    # hidden=32, fc=32, output=1.  batch_block=8 / time_chunk=4 exercise a
    # non-trivial (2 x 2) grid: parallel batch blocks, sequential time chunks.
    B, T, I, H, F, O = 16, 8, 1, 32, 32, 1

    key = jax.random.PRNGKey(0)
    k_x, k_p = jax.random.split(key)
    x = jax.random.normal(k_x, (B, T, I), jnp.float32)
    params = init_params(k_p, I, H, F, O, T)

    ref = drnn_reference(x, params)

    # f32 MXU operands: exact-math check against the HIGHEST-precision ref.
    out = jax.block_until_ready(
        drnn_forward(x, params, time_chunk=4, batch_block=8,
                     mxu_dtype=jnp.float32))
    assert out.shape == (B, O), out.shape
    assert jnp.allclose(out, ref, rtol=1e-4, atol=1e-4), (out, ref)

    # bf16 MXU operands (v6e/v7x perf config), f32 state/accumulation.
    out_bf16 = jax.block_until_ready(
        drnn_forward(x, params, time_chunk=4, batch_block=8,
                     mxu_dtype=jnp.bfloat16))
    assert jnp.allclose(out_bf16, ref, rtol=3e-2, atol=3e-2), (out_bf16, ref)

    print("KERNEL_OK")
</pallas_src>

<mosaic_0001>
module attributes {stable_mosaic.version = 11 : i64} {
  func.func @drnn_kernel(%arg0: i32, %arg1: i32, %arg2: memref<4x8x1xf32, #tpu.memory_space<vmem>>, %arg3: memref<1x128xf32, #tpu.memory_space<vmem>>, %arg4: memref<1x128xf32, #tpu.memory_space<vmem>>, %arg5: memref<32x128xf32, #tpu.memory_space<vmem>>, %arg6: memref<128x32xf32, #tpu.memory_space<vmem>>, %arg7: memref<1x32xf32, #tpu.memory_space<vmem>>, %arg8: memref<32x32xf32, #tpu.memory_space<vmem>>, %arg9: memref<1x32xf32, #tpu.memory_space<vmem>>, %arg10: memref<32x1xf32, #tpu.memory_space<vmem>>, %arg11: memref<1x1xf32, #tpu.memory_space<vmem>>, %arg12: memref<8x1xf32, #tpu.memory_space<vmem>>, %arg13: memref<8x32xf32, #tpu.memory_space<vmem>>, %arg14: memref<8x32xf32, #tpu.memory_space<vmem>>, %arg15: memref<8x32xf32, #tpu.memory_space<vmem>>, %arg16: memref<8x128xf32, #tpu.memory_space<vmem>>) attributes {dimension_semantics = [#tpu.dimension_semantics<parallel>, #tpu.dimension_semantics<arbitrary>], iteration_bounds = array<i64: 2, 2>, scalar_prefetch = 0 : i64, scratch_operands = 4 : i64, tpu.core_type = #tpu.core_type<tc>, window_params = [{transform_indices = @transform_0, window_bounds = array<i64: 4, 8, 1>}, {pipeline_mode = #tpu.pipeline_mode<synchronous>, transform_indices = @transform_1, window_bounds = array<i64: 1, 128>}, {pipeline_mode = #tpu.pipeline_mode<synchronous>, transform_indices = @transform_2, window_bounds = array<i64: 1, 128>}, {pipeline_mode = #tpu.pipeline_mode<synchronous>, transform_indices = @transform_3, window_bounds = array<i64: 32, 128>}, {transform_indices = @transform_4, window_bounds = array<i64: 128, 32>}, {pipeline_mode = #tpu.pipeline_mode<synchronous>, transform_indices = @transform_5, window_bounds = array<i64: 1, 32>}, {pipeline_mode = #tpu.pipeline_mode<synchronous>, transform_indices = @transform_6, window_bounds = array<i64: 32, 32>}, {pipeline_mode = #tpu.pipeline_mode<synchronous>, transform_indices = @transform_7, window_bounds = array<i64: 1, 32>}, {pipeline_mode = #tpu.pipeline_mode<synchronous>, transform_indices = @transform_8, window_bounds = array<i64: 32, 1>}, {pipeline_mode = #tpu.pipeline_mode<synchronous>, transform_indices = @transform_9, window_bounds = array<i64: 1, 1>}, {transform_indices = @transform_10, window_bounds = array<i64: 8, 1>}]} {
    %c0_i32 = arith.constant 0 : i32
    %0 = arith.cmpi eq, %arg1, %c0_i32 : i32
    %1 = arith.extui %0 : i1 to i32
    %c0_i32_0 = arith.constant 0 : i32
    %2 = arith.cmpi ne, %1, %c0_i32_0 : i32
    scf.if %2 {
      %cst_65 = arith.constant 0.000000e+00 : f32
      %165 = vector.broadcast %cst_65 : f32 to vector<8x32xf32>
      %c0_66 = arith.constant 0 : index
      %c0_67 = arith.constant 0 : index
      %166 = vector.load %arg13[%c0_66, %c0_67] : memref<8x32xf32, #tpu.memory_space<vmem>>, vector<8x32xf32>
      tpu.vector_store %arg13[%c0_66, %c0_67], %165 {strides = array<i32>} : memref<8x32xf32, #tpu.memory_space<vmem>>, vector<8x32xf32>,
      %cst_68 = arith.constant 0.000000e+00 : f32
      %167 = vector.broadcast %cst_68 : f32 to vector<8x32xf32>
      %c0_69 = arith.constant 0 : index
      %c0_70 = arith.constant 0 : index
      %168 = vector.load %arg14[%c0_69, %c0_70] : memref<8x32xf32, #tpu.memory_space<vmem>>, vector<8x32xf32>
      tpu.vector_store %arg14[%c0_69, %c0_70], %167 {strides = array<i32>} : memref<8x32xf32, #tpu.memory_space<vmem>>, vector<8x32xf32>,
      %cst_71 = arith.constant 0.000000e+00 : f32
      %169 = vector.broadcast %cst_71 : f32 to vector<8x32xf32>
      %c0_72 = arith.constant 0 : index
      %c0_73 = arith.constant 0 : index
      %170 = vector.load %arg15[%c0_72, %c0_73] : memref<8x32xf32, #tpu.memory_space<vmem>>, vector<8x32xf32>
      tpu.vector_store %arg15[%c0_72, %c0_73], %169 {strides = array<i32>} : memref<8x32xf32, #tpu.memory_space<vmem>>, vector<8x32xf32>,
    } else {
    }
    %c0 = arith.constant 0 : index
    %c0_1 = arith.constant 0 : index
    %3 = vector.load %arg4[%c0, %c0_1] : memref<1x128xf32, #tpu.memory_space<vmem>>, vector<1x128xf32>
    %c0_2 = arith.constant 0 : index
    %c0_3 = arith.constant 0 : index
    %4 = vector.load %arg13[%c0_2, %c0_3] : memref<8x32xf32, #tpu.memory_space<vmem>>, vector<8x32xf32>
    %c0_4 = arith.constant 0 : index
    %c0_5 = arith.constant 0 : index
    %5 = vector.load %arg14[%c0_4, %c0_5] : memref<8x32xf32, #tpu.memory_space<vmem>>, vector<8x32xf32>
    %c0_6 = arith.constant 0 : index
    %c0_7 = arith.constant 0 : index
    %c0_8 = arith.constant 0 : index
    %6 = vector.load %arg2[%c0_6, %c0_7, %c0_8] : memref<4x8x1xf32, #tpu.memory_space<vmem>>, vector<1x8x1xf32>
    %7 = vector.shape_cast %6 : vector<1x8x1xf32> to vector<8x1xf32>
    %c0_9 = arith.constant 0 : index
    %c0_10 = arith.constant 0 : index
    %8 = vector.load %arg3[%c0_9, %c0_10] : memref<1x128xf32, #tpu.memory_space<vmem>>, vector<1x128xf32>
    %9 = vector.broadcast %7 : vector<8x1xf32> to vector<8x128xf32>
    %10 = vector.broadcast %8 : vector<1x128xf32> to vector<8x128xf32>
    %11 = arith.mulf %9, %10 : vector<8x128xf32>
    %12 = vector.broadcast %3 : vector<1x128xf32> to vector<8x128xf32>
    %13 = arith.addf %11, %12 : vector<8x128xf32>
    %c0_11 = arith.constant 0 : index
    %c0_12 = arith.constant 0 : index
    %14 = vector.load %arg5[%c0_11, %c0_12] : memref<32x128xf32, #tpu.memory_space<vmem>>, vector<32x128xf32>
    %cst = arith.constant dense<0.000000e+00> : vector<8x128xf32>
    %15 = tpu.matmul %4, %14, %cst {dimension_numbers = #tpu.dot_dimension_numbers<[1], [0], [0], [1], [0, 0, 1, 1], [], []>} : vector<8x32xf32>, vector<32x128xf32>, vector<8x128xf32> -> vector<8x128xf32>
    %16 = arith.addf %13, %15 : vector<8x128xf32>
    %17 = vector.extract_strided_slice %16 {offsets = [0, 0], sizes = [8, 32], strides = [1, 1]} : vector<8x128xf32> to vector<8x32xf32>
    %18 = arith.negf %17 : vector<8x32xf32>
    %19 = math.exp %18 : vector<8x32xf32>
    %cst_13 = arith.constant 1.000000e+00 : f32
    %20 = vector.broadcast %cst_13 : f32 to vector<8x32xf32>
    %21 = arith.addf %20, %19 : vector<8x32xf32>
    %22 = arith.divf %20, %21 : vector<8x32xf32>
    %23 = vector.extract_strided_slice %16 {offsets = [0, 32], sizes = [8, 32], strides = [1, 1]} : vector<8x128xf32> to vector<8x32xf32>
    %24 = arith.negf %23 : vector<8x32xf32>
    %25 = math.exp %24 : vector<8x32xf32>
    %cst_14 = arith.constant 1.000000e+00 : f32
    %26 = vector.broadcast %cst_14 : f32 to vector<8x32xf32>
    %27 = arith.addf %26, %25 : vector<8x32xf32>
    %28 = arith.divf %26, %27 : vector<8x32xf32>
    %29 = vector.extract_strided_slice %16 {offsets = [0, 64], sizes = [8, 32], strides = [1, 1]} : vector<8x128xf32> to vector<8x32xf32>
    %30 = math.tanh %29 : vector<8x32xf32>
    %31 = vector.extract_strided_slice %16 {offsets = [0, 96], sizes = [8, 32], strides = [1, 1]} : vector<8x128xf32> to vector<8x32xf32>
    %32 = arith.negf %31 : vector<8x32xf32>
    %33 = math.exp %32 : vector<8x32xf32>
    %cst_15 = arith.constant 1.000000e+00 : f32
    %34 = vector.broadcast %cst_15 : f32 to vector<8x32xf32>
    %35 = arith.addf %34, %33 : vector<8x32xf32>
    %36 = arith.divf %34, %35 : vector<8x32xf32>
    %37 = arith.mulf %28, %5 : vector<8x32xf32>
    %38 = arith.mulf %22, %30 : vector<8x32xf32>
    %39 = arith.addf %37, %38 : vector<8x32xf32>
    %40 = math.tanh %39 : vector<8x32xf32>
    %41 = arith.mulf %36, %40 : vector<8x32xf32>
    %c0_16 = arith.constant 0 : index
    %c0_17 = arith.constant 0 : index
    %42 = vector.load %arg16[%c0_16, %c0_17] : memref<8x128xf32, #tpu.memory_space<vmem>>, vector<8x32xf32>
    tpu.vector_store %arg16[%c0_16, %c0_17], %41 {strides = array<i32>} : memref<8x128xf32, #tpu.memory_space<vmem>>, vector<8x32xf32>,
    %c1 = arith.constant 1 : index
    %c0_18 = arith.constant 0 : index
    %c0_19 = arith.constant 0 : index
    %43 = vector.load %arg2[%c1, %c0_18, %c0_19] : memref<4x8x1xf32, #tpu.memory_space<vmem>>, vector<1x8x1xf32>
    %44 = vector.shape_cast %43 : vector<1x8x1xf32> to vector<8x1xf32>
    %c0_20 = arith.constant 0 : index
    %c0_21 = arith.constant 0 : index
    %45 = vector.load %arg3[%c0_20, %c0_21] : memref<1x128xf32, #tpu.memory_space<vmem>>, vector<1x128xf32>
    %46 = vector.broadcast %44 : vector<8x1xf32> to vector<8x128xf32>
    %47 = vector.broadcast %45 : vector<1x128xf32> to vector<8x128xf32>
    %48 = arith.mulf %46, %47 : vector<8x128xf32>
    %49 = vector.broadcast %3 : vector<1x128xf32> to vector<8x128xf32>
    %50 = arith.addf %48, %49 : vector<8x128xf32>
    %c0_22 = arith.constant 0 : index
    %c0_23 = arith.constant 0 : index
    %51 = vector.load %arg5[%c0_22, %c0_23] : memref<32x128xf32, #tpu.memory_space<vmem>>, vector<32x128xf32>
    %cst_24 = arith.constant dense<0.000000e+00> : vector<8x128xf32>
    %52 = tpu.matmul %41, %51, %cst_24 {dimension_numbers = #tpu.dot_dimension_numbers<[1], [0], [0], [1], [0, 0, 1, 1], [], []>} : vector<8x32xf32>, vector<32x128xf32>, vector<8x128xf32> -> vector<8x128xf32>
    %53 = arith.addf %50, %52 : vector<8x128xf32>
    %54 = vector.extract_strided_slice %53 {offsets = [0, 0], sizes = [8, 32], strides = [1, 1]} : vector<8x128xf32> to vector<8x32xf32>
    %55 = arith.negf %54 : vector<8x32xf32>
    %56 = math.exp %55 : vector<8x32xf32>
    %cst_25 = arith.constant 1.000000e+00 : f32
    %57 = vector.broadcast %cst_25 : f32 to vector<8x32xf32>
    %58 = arith.addf %57, %56 : vector<8x32xf32>
    %59 = arith.divf %57, %58 : vector<8x32xf32>
    %60 = vector.extract_strided_slice %53 {offsets = [0, 32], sizes = [8, 32], strides = [1, 1]} : vector<8x128xf32> to vector<8x32xf32>
    %61 = arith.negf %60 : vector<8x32xf32>
    %62 = math.exp %61 : vector<8x32xf32>
    %cst_26 = arith.constant 1.000000e+00 : f32
    %63 = vector.broadcast %cst_26 : f32 to vector<8x32xf32>
    %64 = arith.addf %63, %62 : vector<8x32xf32>
    %65 = arith.divf %63, %64 : vector<8x32xf32>
    %66 = vector.extract_strided_slice %53 {offsets = [0, 64], sizes = [8, 32], strides = [1, 1]} : vector<8x128xf32> to vector<8x32xf32>
    %67 = math.tanh %66 : vector<8x32xf32>
    %68 = vector.extract_strided_slice %53 {offsets = [0, 96], sizes = [8, 32], strides = [1, 1]} : vector<8x128xf32> to vector<8x32xf32>
    %69 = arith.negf %68 : vector<8x32xf32>
    %70 = math.exp %69 : vector<8x32xf32>
    %cst_27 = arith.constant 1.000000e+00 : f32
    %71 = vector.broadcast %cst_27 : f32 to vector<8x32xf32>
    %72 = arith.addf %71, %70 : vector<8x32xf32>
    %73 = arith.divf %71, %72 : vector<8x32xf32>
    %74 = arith.mulf %65, %39 : vector<8x32xf32>
    %75 = arith.mulf %59, %67 : vector<8x32xf32>
    %76 = arith.addf %74, %75 : vector<8x32xf32>
    %77 = math.tanh %76 : vector<8x32xf32>
    %78 = arith.mulf %73, %77 : vector<8x32xf32>
    %c0_28 = arith.constant 0 : index
    %c32 = arith.constant 32 : index
    %79 = vector.load %arg16[%c0_28, %c32] : memref<8x128xf32, #tpu.memory_space<vmem>>, vector<8x32xf32>
    tpu.vector_store %arg16[%c0_28, %c32], %78 {strides = array<i32>} : memref<8x128xf32, #tpu.memory_space<vmem>>, vector<8x32xf32>,
    %c2 = arith.constant 2 : index
    %c0_29 = arith.constant 0 : index
    %c0_30 = arith.constant 0 : index
    %80 = vector.load %arg2[%c2, %c0_29, %c0_30] : memref<4x8x1xf32, #tpu.memory_space<vmem>>, vector<1x8x1xf32>
    %81 = vector.shape_cast %80 : vector<1x8x1xf32> to vector<8x1xf32>
    %c0_31 = arith.constant 0 : index
    %c0_32 = arith.constant 0 : index
    %82 = vector.load %arg3[%c0_31, %c0_32] : memref<1x128xf32, #tpu.memory_space<vmem>>, vector<1x128xf32>
    %83 = vector.broadcast %81 : vector<8x1xf32> to vector<8x128xf32>
    %84 = vector.broadcast %82 : vector<1x128xf32> to vector<8x128xf32>
    %85 = arith.mulf %83, %84 : vector<8x128xf32>
    %86 = vector.broadcast %3 : vector<1x128xf32> to vector<8x128xf32>
    %87 = arith.addf %85, %86 : vector<8x128xf32>
    %c0_33 = arith.constant 0 : index
    %c0_34 = arith.constant 0 : index
    %88 = vector.load %arg5[%c0_33, %c0_34] : memref<32x128xf32, #tpu.memory_space<vmem>>, vector<32x128xf32>
    %cst_35 = arith.constant dense<0.000000e+00> : vector<8x128xf32>
    %89 = tpu.matmul %78, %88, %cst_35 {dimension_numbers = #tpu.dot_dimension_numbers<[1], [0], [0], [1], [0, 0, 1, 1], [], []>} : vector<8x32xf32>, vector<32x128xf32>, vector<8x128xf32> -> vector<8x128xf32>
    %90 = arith.addf %87, %89 : vector<8x128xf32>
    %91 = vector.extract_strided_slice %90 {offsets = [0, 0], sizes = [8, 32], strides = [1, 1]} : vector<8x128xf32> to vector<8x32xf32>
    %92 = arith.negf %91 : vector<8x32xf32>
    %93 = math.exp %92 : vector<8x32xf32>
    %cst_36 = arith.constant 1.000000e+00 : f32
    %94 = vector.broadcast %cst_36 : f32 to vector<8x32xf32>
    %95 = arith.addf %94, %93 : vector<8x32xf32>
    %96 = arith.divf %94, %95 : vector<8x32xf32>
    %97 = vector.extract_strided_slice %90 {offsets = [0, 32], sizes = [8, 32], strides = [1, 1]} : vector<8x128xf32> to vector<8x32xf32>
    %98 = arith.negf %97 : vector<8x32xf32>
    %99 = math.exp %98 : vector<8x32xf32>
    %cst_37 = arith.constant 1.000000e+00 : f32
    %100 = vector.broadcast %cst_37 : f32 to vector<8x32xf32>
    %101 = arith.addf %100, %99 : vector<8x32xf32>
    %102 = arith.divf %100, %101 : vector<8x32xf32>
    %103 = vector.extract_strided_slice %90 {offsets = [0, 64], sizes = [8, 32], strides = [1, 1]} : vector<8x128xf32> to vector<8x32xf32>
    %104 = math.tanh %103 : vector<8x32xf32>
    %105 = vector.extract_strided_slice %90 {offsets = [0, 96], sizes = [8, 32], strides = [1, 1]} : vector<8x128xf32> to vector<8x32xf32>
    %106 = arith.negf %105 : vector<8x32xf32>
    %107 = math.exp %106 : vector<8x32xf32>
    %cst_38 = arith.constant 1.000000e+00 : f32
    %108 = vector.broadcast %cst_38 : f32 to vector<8x32xf32>
    %109 = arith.addf %108, %107 : vector<8x32xf32>
    %110 = arith.divf %108, %109 : vector<8x32xf32>
    %111 = arith.mulf %102, %76 : vector<8x32xf32>
    %112 = arith.mulf %96, %104 : vector<8x32xf32>
    %113 = arith.addf %111, %112 : vector<8x32xf32>
    %114 = math.tanh %113 : vector<8x32xf32>
    %115 = arith.mulf %110, %114 : vector<8x32xf32>
    %c0_39 = arith.constant 0 : index
    %c64 = arith.constant 64 : index
    %116 = vector.load %arg16[%c0_39, %c64] : memref<8x128xf32, #tpu.memory_space<vmem>>, vector<8x32xf32>
    tpu.vector_store %arg16[%c0_39, %c64], %115 {strides = array<i32>} : memref<8x128xf32, #tpu.memory_space<vmem>>, vector<8x32xf32>,
    %c3 = arith.constant 3 : index
    %c0_40 = arith.constant 0 : index
    %c0_41 = arith.constant 0 : index
    %117 = vector.load %arg2[%c3, %c0_40, %c0_41] : memref<4x8x1xf32, #tpu.memory_space<vmem>>, vector<1x8x1xf32>
    %118 = vector.shape_cast %117 : vector<1x8x1xf32> to vector<8x1xf32>
    %c0_42 = arith.constant 0 : index
    %c0_43 = arith.constant 0 : index
    %119 = vector.load %arg3[%c0_42, %c0_43] : memref<1x128xf32, #tpu.memory_space<vmem>>, vector<1x128xf32>
    %120 = vector.broadcast %118 : vector<8x1xf32> to vector<8x128xf32>
    %121 = vector.broadcast %119 : vector<1x128xf32> to vector<8x128xf32>
    %122 = arith.mulf %120, %121 : vector<8x128xf32>
    %123 = vector.broadcast %3 : vector<1x128xf32> to vector<8x128xf32>
    %124 = arith.addf %122, %123 : vector<8x128xf32>
    %c0_44 = arith.constant 0 : index
    %c0_45 = arith.constant 0 : index
    %125 = vector.load %arg5[%c0_44, %c0_45] : memref<32x128xf32, #tpu.memory_space<vmem>>, vector<32x128xf32>
    %cst_46 = arith.constant dense<0.000000e+00> : vector<8x128xf32>
    %126 = tpu.matmul %115, %125, %cst_46 {dimension_numbers = #tpu.dot_dimension_numbers<[1], [0], [0], [1], [0, 0, 1, 1], [], []>} : vector<8x32xf32>, vector<32x128xf32>, vector<8x128xf32> -> vector<8x128xf32>
    %127 = arith.addf %124, %126 : vector<8x128xf32>
    %128 = vector.extract_strided_slice %127 {offsets = [0, 0], sizes = [8, 32], strides = [1, 1]} : vector<8x128xf32> to vector<8x32xf32>
    %129 = arith.negf %128 : vector<8x32xf32>
    %130 = math.exp %129 : vector<8x32xf32>
    %cst_47 = arith.constant 1.000000e+00 : f32
    %131 = vector.broadcast %cst_47 : f32 to vector<8x32xf32>
    %132 = arith.addf %131, %130 : vector<8x32xf32>
    %133 = arith.divf %131, %132 : vector<8x32xf32>
    %134 = vector.extract_strided_slice %127 {offsets = [0, 32], sizes = [8, 32], strides = [1, 1]} : vector<8x128xf32> to vector<8x32xf32>
    %135 = arith.negf %134 : vector<8x32xf32>
    %136 = math.exp %135 : vector<8x32xf32>
    %cst_48 = arith.constant 1.000000e+00 : f32
    %137 = vector.broadcast %cst_48 : f32 to vector<8x32xf32>
    %138 = arith.addf %137, %136 : vector<8x32xf32>
    %139 = arith.divf %137, %138 : vector<8x32xf32>
    %140 = vector.extract_strided_slice %127 {offsets = [0, 64], sizes = [8, 32], strides = [1, 1]} : vector<8x128xf32> to vector<8x32xf32>
    %141 = math.tanh %140 : vector<8x32xf32>
    %142 = vector.extract_strided_slice %127 {offsets = [0, 96], sizes = [8, 32], strides = [1, 1]} : vector<8x128xf32> to vector<8x32xf32>
    %143 = arith.negf %142 : vector<8x32xf32>
    %144 = math.exp %143 : vector<8x32xf32>
    %cst_49 = arith.constant 1.000000e+00 : f32
    %145 = vector.broadcast %cst_49 : f32 to vector<8x32xf32>
    %146 = arith.addf %145, %144 : vector<8x32xf32>
    %147 = arith.divf %145, %146 : vector<8x32xf32>
    %148 = arith.mulf %139, %113 : vector<8x32xf32>
    %149 = arith.mulf %133, %141 : vector<8x32xf32>
    %150 = arith.addf %148, %149 : vector<8x32xf32>
    %151 = math.tanh %150 : vector<8x32xf32>
    %152 = arith.mulf %147, %151 : vector<8x32xf32>
    %c0_50 = arith.constant 0 : index
    %c96 = arith.constant 96 : index
    %153 = vector.load %arg16[%c0_50, %c96] : memref<8x128xf32, #tpu.memory_space<vmem>>, vector<8x32xf32>
    tpu.vector_store %arg16[%c0_50, %c96], %152 {strides = array<i32>} : memref<8x128xf32, #tpu.memory_space<vmem>>, vector<8x32xf32>,
    %c0_51 = arith.constant 0 : index
    %c0_52 = arith.constant 0 : index
    %154 = vector.load %arg13[%c0_51, %c0_52] : memref<8x32xf32, #tpu.memory_space<vmem>>, vector<8x32xf32>
    tpu.vector_store %arg13[%c0_51, %c0_52], %152 {strides = array<i32>} : memref<8x32xf32, #tpu.memory_space<vmem>>, vector<8x32xf32>,
    %c0_53 = arith.constant 0 : index
    %c0_54 = arith.constant 0 : index
    %155 = vector.load %arg14[%c0_53, %c0_54] : memref<8x32xf32, #tpu.memory_space<vmem>>, vector<8x32xf32>
    tpu.vector_store %arg14[%c0_53, %c0_54], %150 {strides = array<i32>} : memref<8x32xf32, #tpu.memory_space<vmem>>, vector<8x32xf32>,
    %c0_55 = arith.constant 0 : index
    %c0_56 = arith.constant 0 : index
    %156 = vector.load %arg15[%c0_55, %c0_56] : memref<8x32xf32, #tpu.memory_space<vmem>>, vector<8x32xf32>
    %c0_57 = arith.constant 0 : index
    %c0_58 = arith.constant 0 : index
    %157 = vector.load %arg16[%c0_57, %c0_58] : memref<8x128xf32, #tpu.memory_space<vmem>>, vector<8x128xf32>
    %c0_59 = arith.constant 0 : index
    %c0_60 = arith.constant 0 : index
    %158 = vector.load %arg6[%c0_59, %c0_60] : memref<128x32xf32, #tpu.memory_space<vmem>>, vector<128x32xf32>
    %cst_61 = arith.constant dense<0.000000e+00> : vector<8x32xf32>
    %159 = tpu.matmul %157, %158, %cst_61 {dimension_numbers = #tpu.dot_dimension_numbers<[1], [0], [0], [1], [0, 0, 1, 1], [], []>} : vector<8x128xf32>, vector<128x32xf32>, vector<8x32xf32> -> vector<8x32xf32>
    %160 = arith.addf %156, %159 : vector<8x32xf32>
    %c0_62 = arith.constant 0 : index
    %c0_63 = arith.constant 0 : index
    %161 = vector.load %arg15[%c0_62, %c0_63] : memref<8x32xf32, #tpu.memory_space<vmem>>, vector<8x32xf32>
    tpu.vector_store %arg15[%c0_62, %c0_63], %160 {strides = array<i32>} : memref<8x32xf32, #tpu.memory_space<vmem>>, vector<8x32xf32>,
    %c1_i32 = arith.constant 1 : i32
    %162 = arith.cmpi eq, %arg1, %c1_i32 : i32
    %163 = arith.extui %162 : i1 to i32
    %c0_i32_64 = arith.constant 0 : i32
    %164 = arith.cmpi ne, %163, %c0_i32_64 : i32
    scf.if %164 {
      %c0_65 = arith.constant 0 : index
      %c0_66 = arith.constant 0 : index
      %165 = vector.load %arg15[%c0_65, %c0_66] : memref<8x32xf32, #tpu.memory_space<vmem>>, vector<8x32xf32>
      %c0_67 = arith.constant 0 : index
      %c0_68 = arith.constant 0 : index
      %166 = vector.load %arg7[%c0_67, %c0_68] : memref<1x32xf32, #tpu.memory_space<vmem>>, vector<1x32xf32>
      %167 = vector.broadcast %166 : vector<1x32xf32> to vector<8x32xf32>
      %168 = arith.addf %165, %167 : vector<8x32xf32>
      %cst_69 = arith.constant 0.000000e+00 : f32
      %169 = vector.broadcast %cst_69 : f32 to vector<8x32xf32>
      %170 = arith.maximumf %168, %169 : vector<8x32xf32>
      %c0_70 = arith.constant 0 : index
      %c0_71 = arith.constant 0 : index
      %171 = vector.load %arg8[%c0_70, %c0_71] : memref<32x32xf32, #tpu.memory_space<vmem>>, vector<32x32xf32>
      %cst_72 = arith.constant dense<0.000000e+00> : vector<8x32xf32>
      %172 = tpu.matmul %170, %171, %cst_72 {dimension_numbers = #tpu.dot_dimension_numbers<[1], [0], [0], [1], [0, 0, 1, 1], [], []>} : vector<8x32xf32>, vector<32x32xf32>, vector<8x32xf32> -> vector<8x32xf32>
      %c0_73 = arith.constant 0 : index
      %c0_74 = arith.constant 0 : index
      %173 = vector.load %arg9[%c0_73, %c0_74] : memref<1x32xf32, #tpu.memory_space<vmem>>, vector<1x32xf32>
      %174 = vector.broadcast %173 : vector<1x32xf32> to vector<8x32xf32>
      %175 = arith.addf %172, %174 : vector<8x32xf32>
      %cst_75 = arith.constant 0.000000e+00 : f32
      %176 = vector.broadcast %cst_75 : f32 to vector<8x32xf32>
      %177 = arith.maximumf %175, %176 : vector<8x32xf32>
      %c0_76 = arith.constant 0 : index
      %c0_77 = arith.constant 0 : index
      %178 = vector.load %arg10[%c0_76, %c0_77] : memref<32x1xf32, #tpu.memory_space<vmem>>, vector<32x1xf32>
      %cst_78 = arith.constant dense<0.000000e+00> : vector<8x1xf32>
      %179 = tpu.matmul %177, %178, %cst_78 {dimension_numbers = #tpu.dot_dimension_numbers<[1], [0], [0], [1], [0, 0, 1, 1], [], []>} : vector<8x32xf32>, vector<32x1xf32>, vector<8x1xf32> -> vector<8x1xf32>
      %c0_79 = arith.constant 0 : index
      %c0_80 = arith.constant 0 : index
      %180 = vector.load %arg11[%c0_79, %c0_80] : memref<1x1xf32, #tpu.memory_space<vmem>>, vector<1x1xf32>
      %181 = vector.broadcast %180 : vector<1x1xf32> to vector<8x1xf32>
      %182 = arith.addf %179, %181 : vector<8x1xf32>
      %c0_81 = arith.constant 0 : index
      %c0_82 = arith.constant 0 : index
      %183 = vector.load %arg12[%c0_81, %c0_82] : memref<8x1xf32, #tpu.memory_space<vmem>>, vector<8x1xf32>
      tpu.vector_store %arg12[%c0_81, %c0_82], %182 {strides = array<i32>} : memref<8x1xf32, #tpu.memory_space<vmem>>, vector<8x1xf32>,
    } else {
    }
    return
  }
  func.func @transform_0(%arg0: i32, %arg1: i32) -> (i32, i32, i32) {
    %c0_i32 = arith.constant 0 : i32
    %c0_i32_0 = arith.constant 0 : i32
    return %arg1, %arg0, %c0_i32 : i32, i32, i32
  }
  func.func @transform_1(%arg0: i32, %arg1: i32) -> (i32, i32) {
    %c0_i32 = arith.constant 0 : i32
    %c0_i32_0 = arith.constant 0 : i32
    %c0_i32_1 = arith.constant 0 : i32
    return %c0_i32, %c0_i32_0 : i32, i32
  }
  func.func @transform_2(%arg0: i32, %arg1: i32) -> (i32, i32) {
    %c0_i32 = arith.constant 0 : i32
    %c0_i32_0 = arith.constant 0 : i32
    %c0_i32_1 = arith.constant 0 : i32
    return %c0_i32, %c0_i32_0 : i32, i32
  }
  func.func @transform_3(%arg0: i32, %arg1: i32) -> (i32, i32) {
    %c0_i32 = arith.constant 0 : i32
    %c0_i32_0 = arith.constant 0 : i32
    %c0_i32_1 = arith.constant 0 : i32
    return %c0_i32, %c0_i32_0 : i32, i32
  }
  func.func @transform_4(%arg0: i32, %arg1: i32) -> (i32, i32) {
    %c0_i32 = arith.constant 0 : i32
    %c0_i32_0 = arith.constant 0 : i32
    return %arg1, %c0_i32 : i32, i32
  }
  func.func @transform_5(%arg0: i32, %arg1: i32) -> (i32, i32) {
    %c0_i32 = arith.constant 0 : i32
    %c0_i32_0 = arith.constant 0 : i32
    %c0_i32_1 = arith.constant 0 : i32
    return %c0_i32, %c0_i32_0 : i32, i32
  }
  func.func @transform_6(%arg0: i32, %arg1: i32) -> (i32, i32) {
    %c0_i32 = arith.constant 0 : i32
    %c0_i32_0 = arith.constant 0 : i32
    %c0_i32_1 = arith.constant 0 : i32
    return %c0_i32, %c0_i32_0 : i32, i32
  }
  func.func @transform_7(%arg0: i32, %arg1: i32) -> (i32, i32) {
    %c0_i32 = arith.constant 0 : i32
    %c0_i32_0 = arith.constant 0 : i32
    %c0_i32_1 = arith.constant 0 : i32
    return %c0_i32, %c0_i32_0 : i32, i32
  }
  func.func @transform_8(%arg0: i32, %arg1: i32) -> (i32, i32) {
    %c0_i32 = arith.constant 0 : i32
    %c0_i32_0 = arith.constant 0 : i32
    %c0_i32_1 = arith.constant 0 : i32
    return %c0_i32, %c0_i32_0 : i32, i32
  }
  func.func @transform_9(%arg0: i32, %arg1: i32) -> (i32, i32) {
    %c0_i32 = arith.constant 0 : i32
    %c0_i32_0 = arith.constant 0 : i32
    %c0_i32_1 = arith.constant 0 : i32
    return %c0_i32, %c0_i32_0 : i32, i32
  }
  func.func @transform_10(%arg0: i32, %arg1: i32) -> (i32, i32) {
    %c0_i32 = arith.constant 0 : i32
    %c0_i32_0 = arith.constant 0 : i32
    return %arg0, %c0_i32 : i32, i32
  }
}

</mosaic_0001>

<llo_original>
// kernel: drnn_forward.1
$region0: #{drnn_forward.1}
  #allocation0 [shape = 'u32[]', space=smem, size = 0x4, offset = 0x4, fixed_abs, tag = 'smem constant byte address 0x4 - core index']
  #allocation1 [shape = 'u32[72,128]{1,0:T(1,128)}', space=vmem, size = 0x9000, scoped, tag = 'internal scratch']
  #allocation2 [shape = 'f32[8,32]{1,0:T(8,128)}', space=vmem, size = 0x1000, scoped, tag = 'scratch operand']
  #allocation3 [shape = 'f32[8,32]{1,0:T(8,128)}', space=vmem, size = 0x1000, scoped, tag = 'scratch operand']
  #allocation4 [shape = 'f32[8,32]{1,0:T(8,128)}', space=vmem, size = 0x1000, scoped, tag = 'scratch operand']
  #allocation5 [shape = 'f32[8,128]{1,0:T(8,128)}', space=vmem, size = 0x1000, scoped, tag = 'scratch operand']
  #allocation6 [shape = 'f32[1,1]{1,0:T(1,128)S(1)}', space=vmem, size = 0x200, scoped, tag = 'scoped memory for drnn_forward.1']
  %s0 = inlined_call_operand.vmem [shape: f32[8,16,1], index: 0, kind: input, shape index: {}]
  %s1 = inlined_call_operand.vmem [shape: f32[1,128], index: 1, kind: input, shape index: {}]
  %s2 = inlined_call_operand.vmem [shape: f32[1,128], index: 2, kind: input, shape index: {}]
  %s3 = inlined_call_operand.vmem [shape: f32[32,128], index: 3, kind: input, shape index: {}]
  %s4 = inlined_call_operand.vmem [shape: f32[256,32], index: 4, kind: input, shape index: {}]
  %s5 = inlined_call_operand.vmem [shape: f32[1,32], index: 5, kind: input, shape index: {}]
  %s6 = inlined_call_operand.vmem [shape: f32[32,32], index: 6, kind: input, shape index: {}]
  %s7 = inlined_call_operand.vmem [shape: f32[1,32], index: 7, kind: input, shape index: {}]
  %s8 = inlined_call_operand.vmem [shape: f32[32,1], index: 8, kind: input, shape index: {}]
  %s9 = inlined_call_operand.<no memory space> [shape: f32[1,1], index: 9, kind: input, shape index: {}]
  %s10 = inlined_call_operand.vmem [shape: f32[16,1], index: 10, kind: output, shape index: {}]
  %s11 = sld [smem:[#allocation0]]
  $region119: #{drnn_forward.1} parent=0
    _
  %s13 = ssub.s32 1, %s11
  %s14 = scalar_select 0, %s13, %s11
  %v15 = vstv %s9
  %16 = vst [vmem:[#allocation6] sm:$0x1] %v15
  $region1: #{drnn_forward.1} parent=0
    #allocation7 [shape = 'u8[32768]{0}', space=vmem, size = 0x8000, scoped, tag = 'input window, operand 0']
    loop: start=0, step=1, limit=6
    $region2: #{drnn_forward.1} parent=1 // loop_pre_header
      _
    $region3: #{drnn_forward.1} parent=1 // loop_header
      %s18 = sphi 0, %s22
      %p19 = scmp.ge.s32.totalorder %s18, 6
      %s25 = sphi 0, %s37
      %s26 = sphi 0, %s33
      %s27 = sphi 0, %s25
      %s28 = sphi 0, %s26
      %s29 = sphi 0, %s27
      %s30 = sphi 0, %s28
      %s42 = sphi 0, %s44
      %s45 = sphi 0, %s42
      %s46 = sphi 0, %s45
      %s62 = sphi 0, %s46
      %s66 = sphi 0, %s66
      %s68 = sphi 0, %s66
      %s69 = sphi 0, %s68
      %s83 = sphi 0, %s69
      %s87 = sphi 0, %s87
      %s89 = sphi 0, %s87
      %s90 = sphi 0, %s89
      %s104 = sphi 0, %s90
      %s108 = sphi 0, %s108
      %s110 = sphi 0, %s108
      %s111 = sphi 0, %s110
      %s125 = sphi 0, %s111
      %s131 = sphi 0, %s133
      %s134 = sphi 0, %s131
      %s135 = sphi 0, %s134
      %s151 = sphi 0, %s135
      %s155 = sphi 0, %s155
      %s157 = sphi 0, %s155
      %s158 = sphi 0, %s157
      %s172 = sphi 0, %s158
      %s176 = sphi 0, %s176
      %s178 = sphi 0, %s176
      %s179 = sphi 0, %s178
      %s193 = sphi 0, %s179
      %s197 = sphi 0, %s197
      %s199 = sphi 0, %s197
      %s200 = sphi 0, %s199
      %s214 = sphi 0, %s200
      %s218 = sphi 0, %s218
      %s220 = sphi 0, %s218
      %s221 = sphi 0, %s220
      %s235 = sphi 0, %s221
      %s239 = sphi 0, %s239
      %s241 = sphi 0, %s239
      %s242 = sphi 0, %s241
      %s256 = sphi 0, %s242
      %s262 = sphi 0, %s264
      %s265 = sphi 0, %s262
      %s266 = sphi 0, %s265
      %s282 = sphi 0, %s266
    $region4: #{drnn_forward.1} parent=1 // loop_header_branch
      %21 = sbr.rel (%p19) target = $region8
    $region5: #{drnn_forward.1} parent=1 // loop_body
      %s23 = ssub.s32 %s18, 1
      %s24 = ssub.s32 %s18, 2
      %s31 = sadd.s32 1, %s26
      %p32 = scmp.ge.s32.totalorder %s31, 2
      %s33 = scalar_select %p32, 0, %s31
      %s34 = sadd.s32 1, %s25
      %s35 = scalar_select %p32, %s34, %s25
      %p36 = scmp.ge.s32.totalorder %s35, 2
      %s37 = scalar_select %p36, 0, %s35
      %s38 = ssub.s32 %s26, %s33
      %s39 = ssub.s32 %s25, %s37
      %s40 = sor.u32 %s38, %s39
      %p41 = scmp.eq.s32.totalorder %s40, 0
      %s43 = sadd.s32 %s42, 1
      %s44 = scalar_select %p41, %s42, %s43
      %p47 = pneg %p41
      %p48 = scmp.eq.s32.totalorder %s18, 3
      %p49 = por %p47, %p48
      %p50 = scmp.ne.s32.totalorder %s42, %s45
      %p51 = scmp.eq.s32.totalorder %s18, 0
      %p52 = por %p50, %p51
      %p53 = scmp.ne.s32.totalorder %s42, %s45
      %p54 = scmp.eq.s32.totalorder %s23, 3
      %p55 = por %p53, %p54
      %p56 = scmp.ne.s32.totalorder %s45, %s46
      %p57 = scmp.eq.s32.totalorder %s23, 0
      %p58 = por %p56, %p57
      %p59 = scmp.ne.s32.totalorder %s45, %s46
      %p60 = scmp.eq.s32.totalorder %s24, 3
      %p61 = por %p59, %p60
      %p63 = scmp.ne.s32.totalorder %s46, %s62
      %p64 = scmp.eq.s32.totalorder %s24, 0
      %p65 = por %p63, %p64
      %s67 = sadd.s32 %s66, 1
      %p70 = scmp.eq.s32.totalorder %s18, 3
      %p71 = scmp.ne.s32.totalorder %s66, %s68
      %p72 = scmp.eq.s32.totalorder %s18, 0
      %p73 = por %p71, %p72
      %p74 = scmp.ne.s32.totalorder %s66, %s68
      %p75 = scmp.eq.s32.totalorder %s23, 3
      %p76 = por %p74, %p75
      %p77 = scmp.ne.s32.totalorder %s68, %s69
      %p78 = scmp.eq.s32.totalorder %s23, 0
      %p79 = por %p77, %p78
      %p80 = scmp.ne.s32.totalorder %s68, %s69
      %p81 = scmp.eq.s32.totalorder %s24, 3
      %p82 = por %p80, %p81
      %p84 = scmp.ne.s32.totalorder %s69, %s83
      %p85 = scmp.eq.s32.totalorder %s24, 0
      %p86 = por %p84, %p85
      %s88 = sadd.s32 %s87, 1
      %p91 = scmp.eq.s32.totalorder %s18, 3
      %p92 = scmp.ne.s32.totalorder %s87, %s89
      %p93 = scmp.eq.s32.totalorder %s18, 0
      %p94 = por %p92, %p93
      %p95 = scmp.ne.s32.totalorder %s87, %s89
      %p96 = scmp.eq.s32.totalorder %s23, 3
      %p97 = por %p95, %p96
      %p98 = scmp.ne.s32.totalorder %s89, %s90
      %p99 = scmp.eq.s32.totalorder %s23, 0
      %p100 = por %p98, %p99
      %p101 = scmp.ne.s32.totalorder %s89, %s90
      %p102 = scmp.eq.s32.totalorder %s24, 3
      %p103 = por %p101, %p102
      %p105 = scmp.ne.s32.totalorder %s90, %s104
      %p106 = scmp.eq.s32.totalorder %s24, 0
      %p107 = por %p105, %p106
      %s109 = sadd.s32 %s108, 1
      %p112 = scmp.eq.s32.totalorder %s18, 3
      %p113 = scmp.ne.s32.totalorder %s108, %s110
      %p114 = scmp.eq.s32.totalorder %s18, 0
      %p115 = por %p113, %p114
      %p116 = scmp.ne.s32.totalorder %s108, %s110
      %p117 = scmp.eq.s32.totalorder %s23, 3
      %p118 = por %p116, %p117
      %p119 = scmp.ne.s32.totalorder %s110, %s111
      %p120 = scmp.eq.s32.totalorder %s23, 0
      %p121 = por %p119, %p120
      %p122 = scmp.ne.s32.totalorder %s110, %s111
      %p123 = scmp.eq.s32.totalorder %s24, 3
      %p124 = por %p122, %p123
      %p126 = scmp.ne.s32.totalorder %s111, %s125
      %p127 = scmp.eq.s32.totalorder %s24, 0
      %p128 = por %p126, %p127
      %s129 = ssub.s32 %s26, %s33
      %p130 = scmp.eq.s32.totalorder %s129, 0
      %s132 = sadd.s32 %s131, 1
      %s133 = scalar_select %p130, %s131, %s132
      %p136 = pneg %p130
      %p137 = scmp.eq.s32.totalorder %s18, 3
      %p138 = por %p136, %p137
      %p139 = scmp.ne.s32.totalorder %s131, %s134
      %p140 = scmp.eq.s32.totalorder %s18, 0
      %p141 = por %p139, %p140
      %p142 = scmp.ne.s32.totalorder %s131, %s134
      %p143 = scmp.eq.s32.totalorder %s23, 3
      %p144 = por %p142, %p143
      %p145 = scmp.ne.s32.totalorder %s134, %s135
      %p146 = scmp.eq.s32.totalorder %s23, 0
      %p147 = por %p145, %p146
      %p148 = scmp.ne.s32.totalorder %s134, %s135
      %p149 = scmp.eq.s32.totalorder %s24, 3
      %p150 = por %p148, %p149
      %p152 = scmp.ne.s32.totalorder %s135, %s151
      %p153 = scmp.eq.s32.totalorder %s24, 0
      %p154 = por %p152, %p153
      %s156 = sadd.s32 %s155, 1
      %p159 = scmp.eq.s32.totalorder %s18, 3
      %p160 = scmp.ne.s32.totalorder %s155, %s157
      %p161 = scmp.eq.s32.totalorder %s18, 0
      %p162 = por %p160, %p161
      %p163 = scmp.ne.s32.totalorder %s155, %s157
      %p164 = scmp.eq.s32.totalorder %s23, 3
      %p165 = por %p163, %p164
      %p166 = scmp.ne.s32.totalorder %s157, %s158
      %p167 = scmp.eq.s32.totalorder %s23, 0
      %p168 = por %p166, %p167
      %p169 = scmp.ne.s32.totalorder %s157, %s158
      %p170 = scmp.eq.s32.totalorder %s24, 3
      %p171 = por %p169, %p170
      %p173 = scmp.ne.s32.totalorder %s158, %s172
      %p174 = scmp.eq.s32.totalorder %s24, 0
      %p175 = por %p173, %p174
      %s177 = sadd.s32 %s176, 1
      %p180 = scmp.eq.s32.totalorder %s18, 3
      %p181 = scmp.ne.s32.totalorder %s176, %s178
      %p182 = scmp.eq.s32.totalorder %s18, 0
      %p183 = por %p181, %p182
      %p184 = scmp.ne.s32.totalorder %s176, %s178
      %p185 = scmp.eq.s32.totalorder %s23, 3
      %p186 = por %p184, %p185
      %p187 = scmp.ne.s32.totalorder %s178, %s179
      %p188 = scmp.eq.s32.totalorder %s23, 0
      %p189 = por %p187, %p188
      %p190 = scmp.ne.s32.totalorder %s178, %s179
      %p191 = scmp.eq.s32.totalorder %s24, 3
      %p192 = por %p190, %p191
      %p194 = scmp.ne.s32.totalorder %s179, %s193
      %p195 = scmp.eq.s32.totalorder %s24, 0
      %p196 = por %p194, %p195
      %s198 = sadd.s32 %s197, 1
      %p201 = scmp.eq.s32.totalorder %s18, 3
      %p202 = scmp.ne.s32.totalorder %s197, %s199
      %p203 = scmp.eq.s32.totalorder %s18, 0
      %p204 = por %p202, %p203
      %p205 = scmp.ne.s32.totalorder %s197, %s199
      %p206 = scmp.eq.s32.totalorder %s23, 3
      %p207 = por %p205, %p206
      %p208 = scmp.ne.s32.totalorder %s199, %s200
      %p209 = scmp.eq.s32.totalorder %s23, 0
      %p210 = por %p208, %p209
      %p211 = scmp.ne.s32.totalorder %s199, %s200
      %p212 = scmp.eq.s32.totalorder %s24, 3
      %p213 = por %p211, %p212
      %p215 = scmp.ne.s32.totalorder %s200, %s214
      %p216 = scmp.eq.s32.totalorder %s24, 0
      %p217 = por %p215, %p216
      %s219 = sadd.s32 %s218, 1
      %p222 = scmp.eq.s32.totalorder %s18, 3
      %p223 = scmp.ne.s32.totalorder %s218, %s220
      %p224 = scmp.eq.s32.totalorder %s18, 0
      %p225 = por %p223, %p224
      %p226 = scmp.ne.s32.totalorder %s218, %s220
      %p227 = scmp.eq.s32.totalorder %s23, 3
      %p228 = por %p226, %p227
      %p229 = scmp.ne.s32.totalorder %s220, %s221
      %p230 = scmp.eq.s32.totalorder %s23, 0
      %p231 = por %p229, %p230
      %p232 = scmp.ne.s32.totalorder %s220, %s221
      %p233 = scmp.eq.s32.totalorder %s24, 3
      %p234 = por %p232, %p233
      %p236 = scmp.ne.s32.totalorder %s221, %s235
      %p237 = scmp.eq.s32.totalorder %s24, 0
      %p238 = por %p236, %p237
      %s240 = sadd.s32 %s239, 1
      %p243 = scmp.eq.s32.totalorder %s18, 3
      %p244 = scmp.ne.s32.totalorder %s239, %s241
      %p245 = scmp.eq.s32.totalorder %s18, 0
      %p246 = por %p244, %p245
      %p247 = scmp.ne.s32.totalorder %s239, %s241
      %p248 = scmp.eq.s32.totalorder %s23, 3
      %p249 = por %p247, %p248
      %p250 = scmp.ne.s32.totalorder %s241, %s242
      %p251 = scmp.eq.s32.totalorder %s23, 0
      %p252 = por %p250, %p251
      %p253 = scmp.ne.s32.totalorder %s241, %s242
      %p254 = scmp.eq.s32.totalorder %s24, 3
      %p255 = por %p253, %p254
      %p257 = scmp.ne.s32.totalorder %s242, %s256
      %p258 = scmp.eq.s32.totalorder %s24, 0
      %p259 = por %p257, %p258
      %s260 = ssub.s32 %s25, %s37
      %p261 = scmp.eq.s32.totalorder %s260, 0
      %s263 = sadd.s32 %s262, 1
      %s264 = scalar_select %p261, %s262, %s263
      %p267 = pneg %p261
      %p268 = scmp.eq.s32.totalorder %s18, 3
      %p269 = por %p267, %p268
      %p270 = scmp.ne.s32.totalorder %s262, %s265
      %p271 = scmp.eq.s32.totalorder %s18, 0
      %p272 = por %p270, %p271
      %p273 = scmp.ne.s32.totalorder %s262, %s265
      %p274 = scmp.eq.s32.totalorder %s23, 3
      %p275 = por %p273, %p274
      %p276 = scmp.ne.s32.totalorder %s265, %s266
      %p277 = scmp.eq.s32.totalorder %s23, 0
      %p278 = por %p276, %p277
      %p279 = scmp.ne.s32.totalorder %s265, %s266
      %p280 = scmp.eq.s32.totalorder %s24, 3
      %p281 = por %p279, %p280
      %p283 = scmp.ne.s32.totalorder %s266, %s282
      %p284 = scmp.eq.s32.totalorder %s24, 0
      %p285 = por %p283, %p284
      %p286 = scmp.le.s32.totalorder 1, %s18
      %p287 = scmp.lt.s32.totalorder %s18, 5
      %p288 = pnand %p286, %p287
      %p289 = pneg %p288
      // Predicated region
      $region9: #{drnn_forward.1} parent=5 // pred_check
        _
      $region10: #{drnn_forward.1} parent=5 // pred_check_branch
        %291 = sbr.rel (%p288) target = $region12
      $region11: #{drnn_forward.1} parent=5 // pred_region
        %s292 = ssub.s32 %s18, 1
        // Predicated region
        $region13: #{drnn_forward.1} parent=11 // pred_check
          %p293 = pneg %p79
        $region14: #{drnn_forward.1} parent=11 // pred_check_branch
          %295 = sbr.rel (%p293) target = $region16
        $region15: #{drnn_forward.1} parent=11 // pred_region
          _
        $region16: #{drnn_forward.1} parent=11 // pred_fallthru
          _
        // Predicated region
        $region17: #{drnn_forward.1} parent=11 // pred_check
          %p296 = pneg %p100
        $region18: #{drnn_forward.1} parent=11 // pred_check_branch
          %298 = sbr.rel (%p296) target = $region20
        $region19: #{drnn_forward.1} parent=11 // pred_region
          _
        $region20: #{drnn_forward.1} parent=11 // pred_fallthru
          _
        // Predicated region
        $region21: #{drnn_forward.1} parent=11 // pred_check
          %p299 = pneg %p121
        $region22: #{drnn_forward.1} parent=11 // pred_check_branch
          %301 = sbr.rel (%p299) target = $region24
        $region23: #{drnn_forward.1} parent=11 // pred_region
          _
        $region24: #{drnn_forward.1} parent=11 // pred_fallthru
          _
        // Predicated region
        $region25: #{drnn_forward.1} parent=11 // pred_check
          %p302 = pneg %p168
        $region26: #{drnn_forward.1} parent=11 // pred_check_branch
          %304 = sbr.rel (%p302) target = $region28
        $region27: #{drnn_forward.1} parent=11 // pred_region
          _
        $region28: #{drnn_forward.1} parent=11 // pred_fallthru
          _
        // Predicated region
        $region29: #{drnn_forward.1} parent=11 // pred_check
          %p305 = pneg %p189
        $region30: #{drnn_forward.1} parent=11 // pred_check_branch
          %307 = sbr.rel (%p305) target = $region32
        $region31: #{drnn_forward.1} parent=11 // pred_region
          _
        $region32: #{drnn_forward.1} parent=11 // pred_fallthru
          _
        // Predicated region
        $region33: #{drnn_forward.1} parent=11 // pred_check
          %p308 = pneg %p210
        $region34: #{drnn_forward.1} parent=11 // pred_check_branch
          %310 = sbr.rel (%p308) target = $region36
        $region35: #{drnn_forward.1} parent=11 // pred_region
          _
        $region36: #{drnn_forward.1} parent=11 // pred_fallthru
          _
        // Predicated region
        $region37: #{drnn_forward.1} parent=11 // pred_check
          %p311 = pneg %p231
        $region38: #{drnn_forward.1} parent=11 // pred_check_branch
          %313 = sbr.rel (%p311) target = $region40
        $region39: #{drnn_forward.1} parent=11 // pred_region
          _
        $region40: #{drnn_forward.1} parent=11 // pred_fallthru
          _
        // Predicated region
        $region41: #{drnn_forward.1} parent=11 // pred_check
          %p314 = pneg %p252
        $region42: #{drnn_forward.1} parent=11 // pred_check_branch
          %316 = sbr.rel (%p314) target = $region44
        $region43: #{drnn_forward.1} parent=11 // pred_region
          _
        $region44: #{drnn_forward.1} parent=11 // pred_fallthru
          _
      $region12: #{drnn_forward.1} parent=5 // pred_fallthru
        _
      %p317 = scmp.lt.s32.totalorder %s18, 4
      // Predicated region
      $region45: #{drnn_forward.1} parent=5 // pred_check
        %p318 = pneg %p317
      $region46: #{drnn_forward.1} parent=5 // pred_check_branch
        %320 = sbr.rel (%p318) target = $region48
      $region47: #{drnn_forward.1} parent=5 // pred_region
        // Predicated region
        $region49: #{drnn_forward.1} parent=47 // pred_check
          %p321 = pneg %p52
        $region50: #{drnn_forward.1} parent=47 // pred_check_branch
          %323 = sbr.rel (%p321) target = $region52
        $region51: #{drnn_forward.1} parent=47 // pred_region
          %s324 = sand.u32 %s42, 1
          %s325 = sand.u32 %s42, 1
          %s326 = smul.addr %s325, 32
          %s327 = scalar_lea.vmem [#allocation7], %s326
          %s328 = smul.u32 4, %s26
          %s329 = smul.addr %s328, 2
          %s330 = sadd.s32 %s25, %s329
          %s331 = smul.addr %s330, 8
          %s332 = scalar_lea.vmem %s0, %s331
          // Predicated region
          $region53: #{drnn_forward.1} parent=51 // pred_check
            _
          $region54: #{drnn_forward.1} parent=51 // pred_check_branch
            %334 = sbr.rel (0) target = $region56
          $region55: #{drnn_forward.1} parent=51 // pred_region
            // Predicated region
            $region57: #{drnn_forward.1} parent=55 // pred_check
              _
            $region58: #{drnn_forward.1} parent=55 // pred_check_branch
              %336 = sbr.rel (0) target = $region60
            $region59: #{drnn_forward.1} parent=55 // pred_region
              // Predicated region
              $region72: #{drnn_forward.1} parent=59 // pred_check
                _
              $region73: #{drnn_forward.1} parent=59 // pred_check_branch
                %358 = sbr.rel (0) target = $region75
              $region74: #{drnn_forward.1} parent=59 // pred_region
                loop: start=0, step=1, limit=1
                $region76: #{drnn_forward.1} parent=74 // loop_pre_header
                  _
                $region77: #{drnn_forward.1} parent=74 // loop_header
                  %s360 = sphi 0, %s364
                  %p361 = scmp.ge.s32.totalorder %s360, 1
                  %s365 = sphi %s332, %s332
                  %s366 = sphi %s327, %s327
                $region78: #{drnn_forward.1} parent=74 // loop_header_branch
                  %363 = sbr.rel (%p361) target = $region82
                $region79: #{drnn_forward.1} parent=74 // loop_body
                  %v367 = vld [vmem:[%s365] sm:$0xff]
                  %368 = vst [vmem:[%s366] sm:$0xff] %v367
                  %v369 = vld [vmem:[%s365 + $0x10] sm:$0xff]
                  %370 = vst [vmem:[%s366 + $0x8] sm:$0xff] %v369
                  %v371 = vld [vmem:[%s365 + $0x20] sm:$0xff]
                  %372 = vst [vmem:[%s366 + $0x10] sm:$0xff] %v371
                  %v373 = vld [vmem:[%s365 + $0x30] sm:$0xff]
                  %374 = vst [vmem:[%s366 + $0x18] sm:$0xff] %v373
                $region80: #{drnn_forward.1} parent=74 // loop_footer
                  %s364 = sadd.s32 1, %s360
                $region81: #{drnn_forward.1} parent=74 // loop_footer_branch
                  %359 = sbr.rel target = $region77
                $region82: #{drnn_forward.1} parent=74 // loop_exit
                  _
              $region75: #{drnn_forward.1} parent=59 // pred_fallthru
                _
              // Predicated region
              $region83: #{drnn_forward.1} parent=59 // pred_check
                _
              $region84: #{drnn_forward.1} parent=59 // pred_check_branch
                %376 = sbr.rel target = $region86
              $region85: #{drnn_forward.1} parent=59 // pred_region
                _
              $region86: #{drnn_forward.1} parent=59 // pred_fallthru
                _
            $region60: #{drnn_forward.1} parent=55 // pred_fallthru
              _
            // Predicated region
            $region61: #{drnn_forward.1} parent=55 // pred_check
              _
            $region62: #{drnn_forward.1} parent=55 // pred_check_branch
              %338 = sbr.rel target = $region64
            $region63: #{drnn_forward.1} parent=55 // pred_region
              %s340 = ssub.s32 256, 1
              loop: start=0, step=1, limit=1
              $region65: #{drnn_forward.1} parent=63 // loop_pre_header
                _
              $region66: #{drnn_forward.1} parent=63 // loop_header
                %s342 = sphi 0, %s346
                %p343 = scmp.ge.s32.totalorder %s342, 1
                %s347 = sphi %s332, %s332
                %s348 = sphi %s327, %s327
              $region67: #{drnn_forward.1} parent=63 // loop_header_branch
                %345 = sbr.rel (%p343) target = $region71
              $region68: #{drnn_forward.1} parent=63 // loop_body
                %v349 = vld [vmem:[%s347] sm:%s340]
                %350 = vst [vmem:[%s348] sm:%s340] %v349
                %v351 = vld [vmem:[%s347 + $0x10] sm:%s340]
                %352 = vst [vmem:[%s348 + $0x8] sm:%s340] %v351
                %v353 = vld [vmem:[%s347 + $0x20] sm:%s340]
                %354 = vst [vmem:[%s348 + $0x10] sm:%s340] %v353
                %v355 = vld [vmem:[%s347 + $0x30] sm:%s340]
                %356 = vst [vmem:[%s348 + $0x18] sm:%s340] %v355
              $region69: #{drnn_forward.1} parent=63 // loop_footer
                %s346 = sadd.s32 1, %s342
              $region70: #{drnn_forward.1} parent=63 // loop_footer_branch
                %341 = sbr.rel target = $region66
              $region71: #{drnn_forward.1} parent=63 // loop_exit
                _
            $region64: #{drnn_forward.1} parent=55 // pred_fallthru
              _
          $region56: #{drnn_forward.1} parent=51 // pred_fallthru
            _
          %377 = vnop
        $region52: #{drnn_forward.1} parent=47 // pred_fallthru
          _
        // Predicated region
        $region87: #{drnn_forward.1} parent=47 // pred_check
          %p378 = pneg %p141
        $region88: #{drnn_forward.1} parent=47 // pred_check_branch
          %380 = sbr.rel (%p378) target = $region90
        $region89: #{drnn_forward.1} parent=47 // pred_region
          %s381 = smul.u32 16, %s26
          %p382 = scmp.lt.s32.totalorder %s381, 31
          %s383 = scalar_select %p382, %s381, 31
          %s384 = smul.addr %s383, 8
          %s385 = scalar_lea.vmem %s4, %s384
          %s386 = smul.u32 16, %s26
        $region90: #{drnn_forward.1} parent=47 // pred_fallthru
          _
      $region48: #{drnn_forward.1} parent=5 // pred_fallthru
        _
      %p387 = scmp.le.s32.totalorder 1, %s18
      %p388 = scmp.lt.s32.totalorder %s18, 5
      %p389 = pnand %p387, %p388
      %p390 = pneg %p389
      // Predicated region
      $region91: #{drnn_forward.1} parent=5 // pred_check
        _
      $region92: #{drnn_forward.1} parent=5 // pred_check_branch
        %392 = sbr.rel (%p389) target = $region94
      $region93: #{drnn_forward.1} parent=5 // pred_region
        %s393 = ssub.s32 %s18, 1
        %s394 = sand.u32 %s45, 1
        %s395 = sand.u32 %s45, 1
        %s396 = smul.addr %s395, 32
        %s397 = scalar_lea.vmem [#allocation7], %s396
        // Predicated region
        $region95: #{drnn_forward.1} parent=93 // pred_check
          %p398 = pneg %p58
        $region96: #{drnn_forward.1} parent=93 // pred_check_branch
          %400 = sbr.rel (%p398) target = $region98
        $region97: #{drnn_forward.1} parent=93 // pred_region
          _
        $region98: #{drnn_forward.1} parent=93 // pred_fallthru
          _
        %s401 = sand.u32 %s45, 1
        %s402 = sand.u32 %s45, 1
        %s403 = smul.addr %s402, 32
        %s404 = scalar_lea.vmem [#allocation7], %s403
        %p405 = pneg %p58
        %p406 = pneg %p55
        %p407 = pneg %p79
        %p408 = pneg %p76
        %p409 = pneg %p100
        %p410 = pneg %p97
        %p411 = pneg %p121
        %p412 = pneg %p118
        %s413 = smul.u32 16, %s28
        %p414 = scmp.lt.s32.totalorder %s413, 31
        %s415 = scalar_select %p414, %s413, 31
        %s416 = smul.addr %s415, 8
        %s417 = scalar_lea.vmem %s4, %s416
        %p418 = pneg %p147
        %p419 = pneg %p144
        %p420 = pneg %p168
        %p421 = pneg %p165
        %p422 = pneg %p189
        %p423 = pneg %p186
        %p424 = pneg %p210
        %p425 = pneg %p207
        %p426 = pneg %p231
        %p427 = pneg %p228
        %p428 = pneg %p252
        %p429 = pneg %p249
        %p430 = pneg %p278
        %p431 = pneg %p275
        %p432 = scmp.lt.s32.totalorder %s27, 1
        %s433 = scalar_select %p432, %s27, 1
        %s434 = smul.addr %s433, 8
        %s435 = scalar_lea.vmem %s10, %s434
        %s436 = smul.u32 4, %s28
        %s437 = smul.u32 16, %s28
        %p438 = scmp.lt.s32.totalorder %s437, 31
        %s439 = scalar_select %p438, %s437, 31
        %s440 = smul.addr %s439, 8
        %s441 = scalar_lea.vmem %s4, %s440
        %s442 = smul.u32 16, %s28
        %p443 = scmp.lt.s32.totalorder %s27, 1
        %s444 = scalar_select %p443, %s27, 1
        %s445 = smul.addr %s444, 8
        %s446 = scalar_lea.vmem %s10, %s445
        %p447 = scmp.eq.s32.totalorder %s28, 0
        // Predicated region
        $region99: #{drnn_forward.1} parent=93 // pred_check
          %p448 = pneg %p447
        $region100: #{drnn_forward.1} parent=93 // pred_check_branch
          %450 = sbr.rel (%p448) target = $region102
        $region101: #{drnn_forward.1} parent=93 // pred_region
          %vm451 = vcmask 261120
          %452 = vst.msk [vmem:[#allocation2] sm:$0xff] %vm451, 0.0
          %453 = vst.msk [vmem:[#allocation3] sm:$0xff] %vm451, 0.0
          %454 = vst.msk [vmem:[#allocation4] sm:$0xff] %vm451, 0.0
        $region102: #{drnn_forward.1} parent=93 // pred_fallthru
          _
        %v455 = vld [vmem:[%s2] sm:$0x1]
        %v456 = vld [vmem:[#allocation2] sm:$0xff]
        %v457 = vld [vmem:[#allocation3] sm:$0xff]
        %v458 = vld [vmem:[%s397] sm:$0xff]
        %v459 = vld [vmem:[%s1] sm:$0x1]
        %461 = vset.pattern.permute.xlu0 0
        %462 = vperm.xlu0 %461, %v458
        %v463 = vpop.permute.xlu0 %462
        %v466 = vperm.slane %v459, 0
        %v468 = vmul.f32 %v463, %v466
        %v470 = vperm.slane %v455, 0
        %v472 = vadd.f32 %v468, %v470
        %v473 = vld [vmem:[%s3] sm:$0xff]
        %v474 = vld [vmem:[%s3 + $0x8] sm:$0xff]
        %v475 = vld [vmem:[%s3 + $0x10] sm:$0xff]
        %v476 = vld [vmem:[%s3 + $0x18] sm:$0xff]
        %vm477 = vcmask 261120
        %v479 = vsel %vm477, %v456, 0
        %481 = vmatpush.msra.mxu0 0.0
        %482 = vmatpush.msra.mxu0 0.0
        %483 = vmatpush.msra.mxu0 0.0
        %484 = vmatpush.msra.mxu0 0.0
        %485 = vmatpush.msra.mxu0 0.0
        %486 = vmatpush.msra.mxu0 0.0
        %487 = vmatpush.msra.mxu0 0.0
        %488 = vmatpush.msra.mxu0 0.0
        %489 = vmatpush.msra.mxu0 0.0
        %490 = vmatpush.msra.mxu0 0.0
        %491 = vmatpush.msra.mxu0 0.0
        %492 = vmatpush.msra.mxu0 0.0
        %493 = vmatpush.msra.mxu0 %v476
        %494 = vmatpush.msra.mxu0 %v475
        %495 = vmatpush.msra.mxu0 %v474
        %496 = vmatpush.msra.mxu0 %v473
        %497 = vmatmul.f32.gmra.mxu0 %v479
        %v498 = vpop.f32.mrf.mxu0
        %v499 = vadd.f32 0.0, %v498
        %500 = vdwg.mxu0
        %v501 = vadd.f32 %v472, %v499
        %v502 = vxor.u32 %v501, 2147483648
        %v503 = vmul.f32 %v502, 1.442695
        %v504 = vpow.pop %v503
        %v505 = vadd.f32 %v504, 1.0
        %v506 = vrcp.pop %v505
        %v507 = vmul.f32 %v505, %v506
        %v508 = vsub.f32 1.0, %v507
        %v509 = vmul.f32 %v506, %v508
        %v510 = vadd.f32 %v506, %v509
        %vm511 = vweird.f32 %v505
        %vm512 = vweird.f32 %v506
        %vm513 = vmor %vm511, %vm512
        %v514 = vsel %vm513, %v506, %v510
        %v515 = vand.u32 2147483647, %v505
        %vm516 = vcmp.eq.f32.partialorder %v515, 8.507059e+37
        %v517 = vand.u32 %v505, 2147483648
        %v518 = vor.u32 1.1754944e-38, %v517
        %v519 = vsel %vm516, %v518, %v514
        %v520 = vmul.f32 1.0, %v519
        %v521 = vtanh.pop %v501
        %523 = vrot.lane.b32.xlu0 %v457, 32
        %v524 = vpop.permute.xlu0 %523
        %v526 = vmul.f32 %v520, %v524
        %528 = vrot.lane.b32.xlu0 %v521, 64
        %v529 = vpop.permute.xlu0 %528
        %v531 = vmul.f32 %v520, %v529
        %533 = vrot.lane.b32.xlu0 %v531, 32
        %v534 = vpop.permute.xlu0 %533
        %v536 = vadd.f32 %v526, %v534
        %v537 = vtanh.pop %v536
        %539 = vrot.lane.b32.xlu0 %v537, 64
        %v540 = vpop.permute.xlu0 %539
        %v542 = vmul.f32 %v520, %v540
        %544 = vrot.lane.b32.xlu0 %v542, 32
        %v545 = vpop.permute.xlu0 %544
        %547 = vst.msk [vmem:[#allocation5] sm:$0xff] %vm477, %v545
        %s548 = scalar_lea.vmem %s397, 8 [#allocation7]
        %v549 = vld [vmem:[%s548] sm:$0xff]
        %v550 = vld [vmem:[%s1] sm:$0x1]
        %552 = vset.pattern.permute.xlu0 0
        %553 = vperm.xlu0 %552, %v549
        %v554 = vpop.permute.xlu0 %553
        %v557 = vperm.slane %v550, 0
        %v559 = vmul.f32 %v554, %v557
        %v560 = vadd.f32 %v559, %v470
        %v561 = vld [vmem:[%s3] sm:$0xff]
        %v562 = vld [vmem:[%s3 + $0x8] sm:$0xff]
        %v563 = vld [vmem:[%s3 + $0x10] sm:$0xff]
        %v564 = vld [vmem:[%s3 + $0x18] sm:$0xff]
        %v565 = vsel %vm477, %v545, 0
        %567 = vmatpush.msra.mxu0 0.0
        %568 = vmatpush.msra.mxu0 0.0
        %569 = vmatpush.msra.mxu0 0.0
        %570 = vmatpush.msra.mxu0 0.0
        %571 = vmatpush.msra.mxu0 0.0
        %572 = vmatpush.msra.mxu0 0.0
        %573 = vmatpush.msra.mxu0 0.0
        %574 = vmatpush.msra.mxu0 0.0
        %575 = vmatpush.msra.mxu0 0.0
        %576 = vmatpush.msra.mxu0 0.0
        %577 = vmatpush.msra.mxu0 0.0
        %578 = vmatpush.msra.mxu0 0.0
        %579 = vmatpush.msra.mxu0 %v564
        %580 = vmatpush.msra.mxu0 %v563
        %581 = vmatpush.msra.mxu0 %v562
        %582 = vmatpush.msra.mxu0 %v561
        %583 = vmatmul.f32.gmra.mxu0 %v565
        %v584 = vpop.f32.mrf.mxu0
        %v585 = vadd.f32 0.0, %v584
        %586 = vdwg.mxu0
        %v587 = vadd.f32 %v560, %v585
        %v588 = vxor.u32 %v587, 2147483648
        %v589 = vmul.f32 %v588, 1.442695
        %v590 = vpow.pop %v589
        %v591 = vadd.f32 %v590, 1.0
        %v592 = vrcp.pop %v591
        %v593 = vmul.f32 %v591, %v592
        %v594 = vsub.f32 1.0, %v593
        %v595 = vmul.f32 %v592, %v594
        %v596 = vadd.f32 %v592, %v595
        %vm597 = vweird.f32 %v591
        %vm598 = vweird.f32 %v592
        %vm599 = vmor %vm597, %vm598
        %v600 = vsel %vm599, %v592, %v596
        %v601 = vand.u32 2147483647, %v591
        %vm602 = vcmp.eq.f32.partialorder %v601, 8.507059e+37
        %v603 = vand.u32 %v591, 2147483648
        %v604 = vor.u32 1.1754944e-38, %v603
        %v605 = vsel %vm602, %v604, %v600
        %v606 = vmul.f32 1.0, %v605
        %v607 = vtanh.pop %v587
        %v608 = vmul.f32 %v606, %v536
        %610 = vrot.lane.b32.xlu0 %v607, 64
        %v611 = vpop.permute.xlu0 %610
        %v613 = vmul.f32 %v606, %v611
        %615 = vrot.lane.b32.xlu0 %v613, 32
        %v616 = vpop.permute.xlu0 %615
        %v618 = vadd.f32 %v608, %v616
        %v619 = vtanh.pop %v618
        %621 = vrot.lane.b32.xlu0 %v619, 64
        %v622 = vpop.permute.xlu0 %621
        %v624 = vmul.f32 %v606, %v622
        %626 = vrot.lane.b32.xlu0 %v624, 64
        %v627 = vpop.permute.xlu0 %626
        %vm629 = vcmask 523520
        %630 = vst.msk [vmem:[#allocation5] sm:$0xff] %vm629, %v627
        %s631 = scalar_lea.vmem %s397, 16 [#allocation7]
        %v632 = vld [vmem:[%s631] sm:$0xff]
        %v633 = vld [vmem:[%s1] sm:$0x1]
        %635 = vset.pattern.permute.xlu0 0
        %636 = vperm.xlu0 %635, %v632
        %v637 = vpop.permute.xlu0 %636
        %v640 = vperm.slane %v633, 0
        %v642 = vmul.f32 %v637, %v640
        %v643 = vadd.f32 %v642, %v470
        %v644 = vld [vmem:[%s3] sm:$0xff]
        %v645 = vld [vmem:[%s3 + $0x8] sm:$0xff]
        %v646 = vld [vmem:[%s3 + $0x10] sm:$0xff]
        %v647 = vld [vmem:[%s3 + $0x18] sm:$0xff]
        %648 = vrot.lane.b32.xlu0 %v624, 32
        %v649 = vpop.permute.xlu0 %648
        %v650 = vsel %vm477, %v649, 0
        %652 = vmatpush.msra.mxu0 0.0
        %653 = vmatpush.msra.mxu0 0.0
        %654 = vmatpush.msra.mxu0 0.0
        %655 = vmatpush.msra.mxu0 0.0
        %656 = vmatpush.msra.mxu0 0.0
        %657 = vmatpush.msra.mxu0 0.0
        %658 = vmatpush.msra.mxu0 0.0
        %659 = vmatpush.msra.mxu0 0.0
        %660 = vmatpush.msra.mxu0 0.0
        %661 = vmatpush.msra.mxu0 0.0
        %662 = vmatpush.msra.mxu0 0.0
        %663 = vmatpush.msra.mxu0 0.0
        %664 = vmatpush.msra.mxu0 %v647
        %665 = vmatpush.msra.mxu0 %v646
        %666 = vmatpush.msra.mxu0 %v645
        %667 = vmatpush.msra.mxu0 %v644
        %668 = vmatmul.f32.gmra.mxu0 %v650
        %v669 = vpop.f32.mrf.mxu0
        %v670 = vadd.f32 0.0, %v669
        %671 = vdwg.mxu0
        %v672 = vadd.f32 %v643, %v670
        %v673 = vxor.u32 %v672, 2147483648
        %v674 = vmul.f32 %v673, 1.442695
        %v675 = vpow.pop %v674
        %v676 = vadd.f32 %v675, 1.0
        %v677 = vrcp.pop %v676
        %v678 = vmul.f32 %v676, %v677
        %v679 = vsub.f32 1.0, %v678
        %v680 = vmul.f32 %v677, %v679
        %v681 = vadd.f32 %v677, %v680
        %vm682 = vweird.f32 %v676
        %vm683 = vweird.f32 %v677
        %vm684 = vmor %vm682, %vm683
        %v685 = vsel %vm684, %v677, %v681
        %v686 = vand.u32 2147483647, %v676
        %vm687 = vcmp.eq.f32.partialorder %v686, 8.507059e+37
        %v688 = vand.u32 %v676, 2147483648
        %v689 = vor.u32 1.1754944e-38, %v688
        %v690 = vsel %vm687, %v689, %v685
        %v691 = vmul.f32 1.0, %v690
        %v692 = vtanh.pop %v672
        %v693 = vmul.f32 %v691, %v618
        %695 = vrot.lane.b32.xlu0 %v692, 64
        %v696 = vpop.permute.xlu0 %695
        %v698 = vmul.f32 %v691, %v696
        %700 = vrot.lane.b32.xlu0 %v698, 32
        %v701 = vpop.permute.xlu0 %700
        %v703 = vadd.f32 %v693, %v701
        %v704 = vtanh.pop %v703
        %706 = vrot.lane.b32.xlu0 %v704, 64
        %v707 = vpop.permute.xlu0 %706
        %v709 = vmul.f32 %v691, %v707
        %711 = vrot.lane.b32.xlu0 %v709, 96
        %v712 = vpop.permute.xlu0 %711
        %vm714 = vcmask 785920
        %715 = vst.msk [vmem:[#allocation5] sm:$0xff] %vm714, %v712
        %s716 = scalar_lea.vmem %s397, 24 [#allocation7]
        %v717 = vld [vmem:[%s716] sm:$0xff]
        %v718 = vld [vmem:[%s1] sm:$0x1]
        %720 = vset.pattern.permute.xlu0 0
        %721 = vperm.xlu0 %720, %v717
        %v722 = vpop.permute.xlu0 %721
        %v725 = vperm.slane %v718, 0
        %v727 = vmul.f32 %v722, %v725
        %v728 = vadd.f32 %v727, %v470
        %v729 = vld [vmem:[%s3] sm:$0xff]
        %v730 = vld [vmem:[%s3 + $0x8] sm:$0xff]
        %v731 = vld [vmem:[%s3 + $0x10] sm:$0xff]
        %v732 = vld [vmem:[%s3 + $0x18] sm:$0xff]
        %733 = vrot.lane.b32.xlu0 %v709, 32
        %v734 = vpop.permute.xlu0 %733
        %v735 = vsel %vm477, %v734, 0
        %737 = vmatpush.msra.mxu0 0.0
        %738 = vmatpush.msra.mxu0 0.0
        %739 = vmatpush.msra.mxu0 0.0
        %740 = vmatpush.msra.mxu0 0.0
        %741 = vmatpush.msra.mxu0 0.0
        %742 = vmatpush.msra.mxu0 0.0
        %743 = vmatpush.msra.mxu0 0.0
        %744 = vmatpush.msra.mxu0 0.0
        %745 = vmatpush.msra.mxu0 0.0
        %746 = vmatpush.msra.mxu0 0.0
        %747 = vmatpush.msra.mxu0 0.0
        %748 = vmatpush.msra.mxu0 0.0
        %749 = vmatpush.msra.mxu0 %v732
        %750 = vmatpush.msra.mxu0 %v731
        %751 = vmatpush.msra.mxu0 %v730
        %752 = vmatpush.msra.mxu0 %v729
        %753 = vmatmul.f32.gmra.mxu0 %v735
        %v754 = vpop.f32.mrf.mxu0
        %v755 = vadd.f32 0.0, %v754
        %756 = vdwg.mxu0
        %v757 = vadd.f32 %v728, %v755
        %v758 = vxor.u32 %v757, 2147483648
        %v759 = vmul.f32 %v758, 1.442695
        %v760 = vpow.pop %v759
        %v761 = vadd.f32 %v760, 1.0
        %v762 = vrcp.pop %v761
        %v763 = vmul.f32 %v761, %v762
        %v764 = vsub.f32 1.0, %v763
        %v765 = vmul.f32 %v762, %v764
        %v766 = vadd.f32 %v762, %v765
        %vm767 = vweird.f32 %v761
        %vm768 = vweird.f32 %v762
        %vm769 = vmor %vm767, %vm768
        %v770 = vsel %vm769, %v762, %v766
        %v771 = vand.u32 2147483647, %v761
        %vm772 = vcmp.eq.f32.partialorder %v771, 8.507059e+37
        %v773 = vand.u32 %v761, 2147483648
        %v774 = vor.u32 1.1754944e-38, %v773
        %v775 = vsel %vm772, %v774, %v770
        %v776 = vmul.f32 1.0, %v775
        %v777 = vtanh.pop %v757
        %v778 = vmul.f32 %v776, %v703
        %780 = vrot.lane.b32.xlu0 %v777, 64
        %v781 = vpop.permute.xlu0 %780
        %v783 = vmul.f32 %v776, %v781
        %785 = vrot.lane.b32.xlu0 %v783, 32
        %v786 = vpop.permute.xlu0 %785
        %v788 = vadd.f32 %v778, %v786
        %v789 = vtanh.pop %v788
        %791 = vrot.lane.b32.xlu0 %v789, 64
        %v792 = vpop.permute.xlu0 %791
        %v794 = vmul.f32 %v776, %v792
        %vm795 = vcmask 1048320
        %796 = vst.msk [vmem:[#allocation5] sm:$0xff] %vm795, %v794
        %798 = vrot.lane.b32.xlu0 %v794, 32
        %v799 = vpop.permute.xlu0 %798
        %801 = vst.msk [vmem:[#allocation2] sm:$0xff] %vm477, %v799
        %803 = vrot.lane.b32.xlu0 %v788, 96
        %v804 = vpop.permute.xlu0 %803
        %806 = vst.msk [vmem:[#allocation3] sm:$0xff] %vm477, %v804
        %v807 = vld [vmem:[#allocation4] sm:$0xff]
        %v808 = vld [vmem:[#allocation5] sm:$0xff]
        %v809 = vld [vmem:[%s441] sm:$0xff]
        %v810 = vld [vmem:[%s441 + $0x8] sm:$0xff]
        %v811 = vld [vmem:[%s441 + $0x10] sm:$0xff]
        %v812 = vld [vmem:[%s441 + $0x18] sm:$0xff]
        %v813 = vld [vmem:[%s441 + $0x20] sm:$0xff]
        %v814 = vld [vmem:[%s441 + $0x28] sm:$0xff]
        %v815 = vld [vmem:[%s441 + $0x30] sm:$0xff]
        %v816 = vld [vmem:[%s441 + $0x38] sm:$0xff]
        %v817 = vld [vmem:[%s441 + $0x40] sm:$0xff]
        %v818 = vld [vmem:[%s441 + $0x48] sm:$0xff]
        %v819 = vld [vmem:[%s441 + $0x50] sm:$0xff]
        %v820 = vld [vmem:[%s441 + $0x58] sm:$0xff]
        %v821 = vld [vmem:[%s441 + $0x60] sm:$0xff]
        %v822 = vld [vmem:[%s441 + $0x68] sm:$0xff]
        %v823 = vld [vmem:[%s441 + $0x70] sm:$0xff]
        %v824 = vld [vmem:[%s441 + $0x78] sm:$0xff]
        %825 = vmatpush.msra.mxu0 %v824
        %826 = vmatpush.msra.mxu0 %v823
        %827 = vmatpush.msra.mxu0 %v822
        %828 = vmatpush.msra.mxu0 %v821
        %829 = vmatpush.msra.mxu0 %v820
        %830 = vmatpush.msra.mxu0 %v819
        %831 = vmatpush.msra.mxu0 %v818
        %832 = vmatpush.msra.mxu0 %v817
        %833 = vmatpush.msra.mxu0 %v816
        %834 = vmatpush.msra.mxu0 %v815
        %835 = vmatpush.msra.mxu0 %v814
        %836 = vmatpush.msra.mxu0 %v813
        %837 = vmatpush.msra.mxu0 %v812
        %838 = vmatpush.msra.mxu0 %v811
        %839 = vmatpush.msra.mxu0 %v810
        %840 = vmatpush.msra.mxu0 %v809
        %841 = vmatmul.f32.gmra.mxu0 %v808
        %v842 = vpop.f32.mrf.mxu0
        %v843 = vadd.f32 0.0, %v842
        %844 = vdwg.mxu0
        %v845 = vadd.f32 %v807, %v843
        %846 = vst.msk [vmem:[#allocation4] sm:$0xff] %vm477, %v845
        %p847 = scmp.eq.s32.totalorder %s28, 1
        // Predicated region
        $region103: #{drnn_forward.1} parent=93 // pred_check
          %p848 = pneg %p847
        $region104: #{drnn_forward.1} parent=93 // pred_check_branch
          %850 = sbr.rel (%p848) target = $region106
        $region105: #{drnn_forward.1} parent=93 // pred_region
          %v851 = vld [vmem:[#allocation4] sm:$0xff]
          %v852 = vld [vmem:[%s5] sm:$0x1]
          %v854 = vperm.slane %v852, 0
          %v856 = vadd.f32 %v851, %v854
          %v857 = vmax.f32 %v856, 0.0
          %v858 = vld [vmem:[%s6] sm:$0xff]
          %v859 = vld [vmem:[%s6 + $0x8] sm:$0xff]
          %v860 = vld [vmem:[%s6 + $0x10] sm:$0xff]
          %v861 = vld [vmem:[%s6 + $0x18] sm:$0xff]
          %v862 = vld [vmem:[%s7] sm:$0x1]
          %v864 = vperm.slane %v862, 0
          %v867 = vsel %vm477, %v857, 0
          %869 = vmatpush.msra.mxu0 0.0
          %870 = vmatpush.msra.mxu0 0.0
          %871 = vmatpush.msra.mxu0 0.0
          %872 = vmatpush.msra.mxu0 0.0
          %873 = vmatpush.msra.mxu0 0.0
          %874 = vmatpush.msra.mxu0 0.0
          %875 = vmatpush.msra.mxu0 0.0
          %876 = vmatpush.msra.mxu0 0.0
          %877 = vmatpush.msra.mxu0 0.0
          %878 = vmatpush.msra.mxu0 0.0
          %879 = vmatpush.msra.mxu0 0.0
          %880 = vmatpush.msra.mxu0 0.0
          %881 = vmatpush.msra.mxu0 %v861
          %882 = vmatpush.msra.mxu0 %v860
          %883 = vmatpush.msra.mxu0 %v859
          %884 = vmatpush.msra.mxu0 %v858
          %885 = vmatmul.f32.gmra.mxu0 %v867
          %v886 = vpop.f32.mrf.mxu0
          %v887 = vadd.f32 %v864, %v886
          %888 = vdwg.mxu0
          %v889 = vmax.f32 %v887, 0.0
          %v890 = vld [vmem:[%s8] sm:$0xff]
          %v891 = vld [vmem:[%s8 + $0x8] sm:$0xff]
          %v892 = vld [vmem:[%s8 + $0x10] sm:$0xff]
          %v893 = vld [vmem:[%s8 + $0x18] sm:$0xff]
          %v894 = vld [vmem:[#allocation6] sm:$0x1]
          %v896 = vperm.slane %v894, 0
          %v899 = vsel %vm477, %v889, 0
          %901 = vmatpush.msra.mxu0 0.0
          %902 = vmatpush.msra.mxu0 0.0
          %903 = vmatpush.msra.mxu0 0.0
          %904 = vmatpush.msra.mxu0 0.0
          %905 = vmatpush.msra.mxu0 0.0
          %906 = vmatpush.msra.mxu0 0.0
          %907 = vmatpush.msra.mxu0 0.0
          %908 = vmatpush.msra.mxu0 0.0
          %909 = vmatpush.msra.mxu0 0.0
          %910 = vmatpush.msra.mxu0 0.0
          %911 = vmatpush.msra.mxu0 0.0
          %912 = vmatpush.msra.mxu0 0.0
          %913 = vmatpush.msra.mxu0 %v893
          %914 = vmatpush.msra.mxu0 %v892
          %915 = vmatpush.msra.mxu0 %v891
          %916 = vmatpush.msra.mxu0 %v890
          %917 = vmatmul.f32.gmra.mxu0 %v899
          %v918 = vpop.f32.mrf.mxu0
          %v919 = vadd.f32 %v896, %v918
          %920 = vdwg.mxu0
          %vm921 = vcmask 7168
          %922 = vst.msk [vmem:[%s446] sm:$0xff] %vm921, %v919
        $region106: #{drnn_forward.1} parent=93 // pred_fallthru
          _
        %p923 = scmp.lt.s32.totalorder %s27, 1
        %s924 = scalar_select %p923, %s27, 1
        %s925 = smul.addr %s924, 8
        %s926 = scalar_lea.vmem %s10, %s925
        // Predicated region
        $region107: #{drnn_forward.1} parent=93 // pred_check
          %p927 = pneg %p275
        $region108: #{drnn_forward.1} parent=93 // pred_check_branch
          %929 = sbr.rel (%p927) target = $region110
        $region109: #{drnn_forward.1} parent=93 // pred_region
          _
        $region110: #{drnn_forward.1} parent=93 // pred_fallthru
          _
      $region94: #{drnn_forward.1} parent=5 // pred_fallthru
        _
      %p930 = scmp.le.s32.totalorder 2, %s18
      // Predicated region
      $region111: #{drnn_forward.1} parent=5 // pred_check
        %p931 = pneg %p930
      $region112: #{drnn_forward.1} parent=5 // pred_check_branch
        %933 = sbr.rel (%p931) target = $region114
      $region113: #{drnn_forward.1} parent=5 // pred_region
        %s934 = ssub.s32 %s18, 2
        // Predicated region
        $region115: #{drnn_forward.1} parent=113 // pred_check
          %p935 = pneg %p281
        $region116: #{drnn_forward.1} parent=113 // pred_check_branch
          %937 = sbr.rel (%p935) target = $region118
        $region117: #{drnn_forward.1} parent=113 // pred_region
          %p938 = scmp.lt.s32.totalorder %s29, 1
          %s939 = scalar_select %p938, %s29, 1
          %s940 = smul.addr %s939, 8
          %s941 = scalar_lea.vmem %s10, %s940
        $region118: #{drnn_forward.1} parent=113 // pred_fallthru
          _
      $region114: #{drnn_forward.1} parent=5 // pred_fallthru
        _
    $region6: #{drnn_forward.1} parent=1 // loop_footer
      %s22 = sadd.s32 1, %s18
    $region7: #{drnn_forward.1} parent=1 // loop_footer_branch
      %17 = sbr.rel target = $region3
    $region8: #{drnn_forward.1} parent=1 // loop_exit
      _

</llo_original>
